<compile_context>
chip_gen: v7x
topology: tpu7x:2x2x1
jax: 0.10.0
libtpu: 0.0.40
codegen_flags: <defaults>
</compile_context>

<pallas_src>
import jax
import jax.numpy as jnp
from jax import lax
from jax.experimental import pallas as pl
from jax.experimental.pallas import tpu as pltpu


def _round_up(a, b):
    return (a + b - 1) // b * b


def _tile_m(M, K, Cp):
    """Pick the M-tile size from VMEM capacity (lane-padded K accounted for)."""
    Kp = _round_up(K, 128)                       # p tiles are lane-padded in VMEM
    try:
        cap = pltpu.get_tpu_info().vmem_capacity_bytes
    except Exception:
        cap = 64 * 1024 * 1024                   # conservative (v7x-sized) fallback
    budget = cap // 2 - (4 << 20)
    # Worst-pass VMEM bytes per TM row: double-buffered bf16 p tile (16*Kp) plus
    # f32 conv temporaries and bf16-y / f32-out double buffers (~48*Cp).
    per_row = 16 * Kp + 48 * Cp
    # Fixed costs: double-buffered weights, stats blocks, misc headroom.
    fixed = 4 * _round_up(K, 8) * Cp * 2 + 4 * 8 * Cp * 4 * 2 + (1 << 20)
    tm = max(16, (budget - fixed) // per_row)
    tm = min(tm, 1024)            # v6e: HBM-roofline fraction plateaus ~512-1024 rows
    if 2 * tm >= M:
        # Always leave >= 2 grid steps so both v7x TensorCores get work.
        TM = max(16, _round_up(pl.cdiv(M, 2), 16))
    elif tm >= 128:
        TM = (tm // 128) * 128
    else:
        TM = max(16, (tm // 16) * 16)
    Mp = _round_up(M, TM)
    need = TM * per_row + fixed
    vmem_limit = int(min(cap - (2 << 20), max(need + need // 2, 32 << 20)))
    return TM, Mp, vmem_limit


# ----------------------------------------------------------------------------
# Kernel helpers
# ----------------------------------------------------------------------------
def _conv_rows(p_ref, w_ref):
    """(4,TM,K)x(K,Cp) as one merged (4*TM,K) MXU matmul with f32 accumulation."""
    q, tm, k = p_ref.shape
    lhs = p_ref[...].reshape(q * tm, k)          # leading-dim merge: layout no-op
    return jnp.dot(lhs, w_ref[...], preferred_element_type=jnp.float32)


def _sublane_partials(y):
    """(R,Cp) f32 -> (8,Cp) per-tile sum / sum-of-squares partials (VPU adds)."""
    r, cp = y.shape
    yg = y.reshape(r // 8, 8, cp)
    return jnp.sum(yg, axis=0), jnp.sum(yg * yg, axis=0)


# Pass 1a (recompute plan): conv matmul -> BN partial statistics only.
def conv_stats_kernel(p_ref, w_ref, s1_ref, s2_ref):
    y = _conv_rows(p_ref, w_ref)
    s1, s2 = _sublane_partials(y)
    s1_ref[...] = s1
    s2_ref[...] = s2


# Pass 1b (store-y plan, large K): also stores the pre-BN conv output as bf16.
def conv_y_stats_kernel(p_ref, w_ref, y_ref, s1_ref, s2_ref):
    y = _conv_rows(p_ref, w_ref)
    s1, s2 = _sublane_partials(y)
    y_ref[...] = y.reshape(y_ref.shape).astype(jnp.bfloat16)
    s1_ref[...] = s1
    s2_ref[...] = s2


# Pass 2a (recompute plan): conv matmul again + fused BN + ReLU + 2x2 max-pool.
def conv_bn_relu_pool_kernel(scale_ref, shift_ref, p_ref, w_ref, o_ref):
    q, tm, _ = p_ref.shape
    y = _conv_rows(p_ref, w_ref).reshape(q, tm, -1)
    a = jnp.maximum(y * scale_ref[...] + shift_ref[...], 0.0)
    o_ref[...] = jnp.max(a, axis=0)              # max over the 4 pool positions


# Pass 2b (store-y plan): BN + ReLU + pool on the stored bf16 conv output.
def bn_relu_pool_kernel(scale_ref, shift_ref, y_ref, o_ref):
    y = y_ref[...].astype(jnp.float32)
    a = jnp.maximum(y * scale_ref[...] + shift_ref[...], 0.0)
    o_ref[...] = jnp.max(a, axis=0)


# ----------------------------------------------------------------------------
# Wrapper: layout glue in plain JAX, hot path inside the Pallas calls
# ----------------------------------------------------------------------------
def cnn_block_forward(x_nchw, params):
    w_conv, b_conv, w_skip, b_skip, gamma, beta = params    # biases cancel under BN
    N, Cin, H, W = x_nchw.shape
    Cout = w_conv.shape[0]
    Ho, Wo = H // 2, W // 2
    M = N * Ho * Wo
    K = 9 * Cin
    Cp = _round_up(Cout, 128)                                # lane-dense channels

    # --- glue: NHWC, bf16 EARLY (halves wrapper relayouts), 'same' pad, im2col,
    #     2x2 pool-position split.  Dropout(p=0) is the identity. ---------------
    x = jnp.transpose(x_nchw, (0, 2, 3, 1)).astype(jnp.bfloat16)
    xp = jnp.pad(x, ((0, 0), (1, 1), (1, 1), (0, 0)))
    taps = [xp[:, dy:dy + H, dx:dx + W, :] for dy in range(3) for dx in range(3)]
    patches = jnp.concatenate(taps, axis=-1)                 # (N, H, W, 9*Cin) bf16
    patches = patches[:, :2 * Ho, :2 * Wo, :]                # MaxPool floors odd H/W
    p_bf = patches.reshape(N, Ho, 2, Wo, 2, K)
    p_bf = jnp.transpose(p_bf, (2, 4, 0, 1, 3, 5)).reshape(4, M, K)
    # TODO(synk): replace the materialized im2col with in-kernel halo'd x-tile
    # DMAs (9 shifted accumulating matmuls) to cut the remaining ~9x HBM read.

    # --- fold the 1-channel skip conv into the 3x3 center tap (the module's skip
    #     broadcasts over Cout); per-channel biases cancel under train-mode BN. --
    w3 = jnp.transpose(w_conv, (2, 3, 1, 0)).reshape(K, Cout)
    w3 = w3.at[4 * Cin:5 * Cin, :].add(w_skip.reshape(Cin)[:, None])
    w3_bf = jnp.pad(w3, ((0, 0), (0, Cp - Cout))).astype(jnp.bfloat16)

    TM, Mp, vmem_limit = _tile_m(M, K, Cp)
    if Mp > M:
        # zero rows -> conv rows are exactly 0 -> BN sums unperturbed (n uses M)
        p_bf = jnp.pad(p_bf, ((0, 0), (0, Mp - M), (0, 0)))
    num_tiles = Mp // TM

    p_spec = pl.BlockSpec((4, TM, K), lambda i: (0, i, 0))
    w_spec = pl.BlockSpec((K, Cp), lambda i: (0, 0))
    stat_spec = pl.BlockSpec((8, Cp), lambda i: (i, 0))
    stat_shape = jax.ShapeDtypeStruct((num_tiles * 8, Cp), jnp.float32)
    cparams = pltpu.CompilerParams(dimension_semantics=("parallel",),
                                   vmem_limit_bytes=vmem_limit)

    # Lower-traffic plan: re-reading p in pass 2 costs 8*K B/row; writing+reading
    # a bf16 y costs 16*Cp B/row.  Recompute wins whenever K <= 2*Cp.
    recompute = K <= 2 * Cp

    mm_flops = 2 * 4 * Mp * K * Cp
    p_bytes = 4 * Mp * K * 2
    w_bytes = K * Cp * 2
    stat_bytes = 2 * num_tiles * 8 * Cp * 4

    # --- pass 1: conv + BN partial statistics (no f32 y round-trip) ------------
    if recompute:
        s1p, s2p = pl.pallas_call(
            conv_stats_kernel,
            out_shape=(stat_shape, stat_shape),
            grid_spec=pltpu.PrefetchScalarGridSpec(
                num_scalar_prefetch=0, grid=(num_tiles,),
                in_specs=[p_spec, w_spec],
                out_specs=[stat_spec, stat_spec]),
            compiler_params=cparams,
            cost_estimate=pl.CostEstimate(
                flops=mm_flops + 8 * Mp * Cp, transcendentals=0,
                bytes_accessed=p_bytes + w_bytes + stat_bytes),
        )(p_bf, w3_bf)
        y_pre = None
    else:
        y_pre, s1p, s2p = pl.pallas_call(
            conv_y_stats_kernel,
            out_shape=(jax.ShapeDtypeStruct((4, Mp, Cp), jnp.bfloat16),
                       stat_shape, stat_shape),
            grid_spec=pltpu.PrefetchScalarGridSpec(
                num_scalar_prefetch=0, grid=(num_tiles,),
                in_specs=[p_spec, w_spec],
                out_specs=[pl.BlockSpec((4, TM, Cp), lambda i: (0, i, 0)),
                           stat_spec, stat_spec]),
            compiler_params=cparams,
            cost_estimate=pl.CostEstimate(
                flops=mm_flops + 8 * Mp * Cp, transcendentals=0,
                bytes_accessed=p_bytes + w_bytes + stat_bytes + 4 * Mp * Cp * 2),
        )(p_bf, w3_bf)

    # --- tiny O(Cout) stats merge + pre-fused BN constants (plain JAX) ---------
    # TODO(synk): the E[y^2]-E[y]^2 merge can cancel in f32 for very large M; use
    # a per-tile-shifted second moment if that regime matters.
    n = 4.0 * M
    mean = jnp.sum(s1p, axis=0) / n
    var = jnp.sum(s2p, axis=0) / n - mean * mean               # biased var (BN train)
    gamma_p = jnp.pad(gamma, (0, Cp - Cout))
    beta_p = jnp.pad(beta, (0, Cp - Cout))
    sc = gamma_p * lax.rsqrt(var + 1e-5)
    sh = beta_p - mean * sc
    scale = sc.reshape(1, 1, Cp).astype(jnp.float32)
    shift = sh.reshape(1, 1, Cp).astype(jnp.float32)
    bc_spec = pl.BlockSpec((1, 1, Cp), lambda i: (0, 0, 0))

    # --- pass 2: (re)compute conv, BN scale/shift, ReLU, 2x2 max-pool ----------
    out_shape = jax.ShapeDtypeStruct((Mp, Cp), jnp.float32)
    out_spec = pl.BlockSpec((TM, Cp), lambda i: (i, 0))
    if recompute:
        out_p = pl.pallas_call(
            conv_bn_relu_pool_kernel,
            out_shape=out_shape,
            grid_spec=pltpu.PrefetchScalarGridSpec(
                num_scalar_prefetch=0, grid=(num_tiles,),
                in_specs=[bc_spec, bc_spec, p_spec, w_spec],
                out_specs=out_spec),
            compiler_params=cparams,
            cost_estimate=pl.CostEstimate(
                flops=mm_flops + 11 * Mp * Cp, transcendentals=0,
                bytes_accessed=p_bytes + w_bytes + 2 * Cp * 4 + Mp * Cp * 4),
        )(scale, shift, p_bf, w3_bf)
    else:
        out_p = pl.pallas_call(
            bn_relu_pool_kernel,
            out_shape=out_shape,
            grid_spec=pltpu.PrefetchScalarGridSpec(
                num_scalar_prefetch=0, grid=(num_tiles,),
                in_specs=[bc_spec, bc_spec,
                          pl.BlockSpec((4, TM, Cp), lambda i: (0, i, 0))],
                out_specs=out_spec),
            compiler_params=cparams,
            cost_estimate=pl.CostEstimate(
                flops=11 * Mp * Cp, transcendentals=0,
                bytes_accessed=4 * Mp * Cp * 2 + 2 * Cp * 4 + Mp * Cp * 4),
        )(scale, shift, y_pre)

    out = out_p[:M, :Cout].reshape(N, Ho, Wo, Cout)
    return jnp.transpose(out, (0, 3, 1, 2))                    # back to NCHW


# ----------------------------------------------------------------------------
# Pure-JAX reference (ground truth for the sanity check)
# ----------------------------------------------------------------------------
def cnn_block_reference(x, params):
    w_conv, b_conv, w_skip, b_skip, gamma, beta = params
    prec = lax.Precision.HIGHEST
    conv = lax.conv_general_dilated(
        x, w_conv, (1, 1), 'SAME',
        dimension_numbers=('NCHW', 'OIHW', 'NCHW'), precision=prec
    ) + b_conv[None, :, None, None]
    skip = lax.conv_general_dilated(
        x, w_skip, (1, 1), 'SAME',
        dimension_numbers=('NCHW', 'OIHW', 'NCHW'), precision=prec
    ) + b_skip[None, :, None, None]
    y = conv + skip
    mean = jnp.mean(y, axis=(0, 2, 3), keepdims=True)
    var = jnp.mean((y - mean) ** 2, axis=(0, 2, 3), keepdims=True)
    y = (y - mean) * lax.rsqrt(var + 1e-5) * gamma[None, :, None, None] \
        + beta[None, :, None, None]
    y = jnp.maximum(y, 0.0)
    N, C, H, W = y.shape
    return y.reshape(N, C, H // 2, 2, W // 2, 2).max(axis=(3, 5))


if __name__ == "__main__":
    N, Cin, Cout, H, W = 2, 4, 8, 16, 16

    key = jax.random.PRNGKey(0)
    k = jax.random.split(key, 7)
    x = jax.random.normal(k[0], (N, Cin, H, W), jnp.float32)

    w_conv = 0.1 * jax.random.normal(k[1], (Cout, Cin, 3, 3), jnp.float32)
    b_conv = 0.1 * jax.random.normal(k[2], (Cout,), jnp.float32)
    w_skip = 0.1 * jax.random.normal(k[3], (1, Cin, 1, 1), jnp.float32)
    b_skip = 0.1 * jax.random.normal(k[4], (1,), jnp.float32)
    gamma = 1.0 + 0.1 * jax.random.normal(k[5], (Cout,), jnp.float32)
    beta = 0.1 * jax.random.normal(k[6], (Cout,), jnp.float32)
    params = (w_conv, b_conv, w_skip, b_skip, gamma, beta)

    fwd = jax.jit(cnn_block_forward)
    out = jax.block_until_ready(fwd(x, params))
    ref = jax.block_until_ready(cnn_block_reference(x, params))

    assert out.shape == (N, Cout, H // 2, W // 2), out.shape
    # bf16 matmul inputs (f32 accumulation) vs. the f32 HIGHEST-precision reference.
    assert jnp.allclose(out, ref, atol=2e-2, rtol=2e-2), float(
        jnp.max(jnp.abs(out - ref)))

    print("KERNEL_OK")
</pallas_src>

<mosaic_0001>
module attributes {stable_mosaic.version = 11 : i64} {
  func.func @conv_stats_kernel(%arg0: i32, %arg1: memref<4x64x36xbf16, #tpu.memory_space<vmem>>, %arg2: memref<36x128xbf16, #tpu.memory_space<vmem>>, %arg3: memref<8x128xf32, #tpu.memory_space<vmem>>, %arg4: memref<8x128xf32, #tpu.memory_space<vmem>>) attributes {dimension_semantics = [#tpu.dimension_semantics<parallel>], iteration_bounds = array<i64: 2>, scalar_prefetch = 0 : i64, scratch_operands = 0 : i64, tpu.core_type = #tpu.core_type<tc>, window_params = [{transform_indices = @transform_0, window_bounds = array<i64: 4, 64, 36>}, {pipeline_mode = #tpu.pipeline_mode<synchronous>, transform_indices = @transform_1, window_bounds = array<i64: 36, 128>}, {transform_indices = @transform_2, window_bounds = array<i64: 8, 128>}, {transform_indices = @transform_3, window_bounds = array<i64: 8, 128>}]} {
    %c0 = arith.constant 0 : index
    %c0_0 = arith.constant 0 : index
    %c0_1 = arith.constant 0 : index
    %0 = vector.load %arg1[%c0, %c0_0, %c0_1] : memref<4x64x36xbf16, #tpu.memory_space<vmem>>, vector<4x64x36xbf16>
    %1 = vector.shape_cast %0 : vector<4x64x36xbf16> to vector<256x36xbf16>
    %c0_2 = arith.constant 0 : index
    %c0_3 = arith.constant 0 : index
    %2 = vector.load %arg2[%c0_2, %c0_3] : memref<36x128xbf16, #tpu.memory_space<vmem>>, vector<36x128xbf16>
    %cst = arith.constant dense<0.000000e+00> : vector<256x128xf32>
    %3 = tpu.matmul %1, %2, %cst {dimension_numbers = #tpu.dot_dimension_numbers<[1], [0], [0], [1], [0, 0, 1, 1], [], []>} : vector<256x36xbf16>, vector<36x128xbf16>, vector<256x128xf32> -> vector<256x128xf32>
    %4 = vector.shape_cast %3 : vector<256x128xf32> to vector<32x8x128xf32>
    %cst_4 = arith.constant dense<0.000000e+00> : vector<8x128xf32>
    %5 = vector.multi_reduction <add>, %4, %cst_4 [0] : vector<32x8x128xf32> to vector<8x128xf32>
    %6 = arith.mulf %4, %4 : vector<32x8x128xf32>
    %cst_5 = arith.constant dense<0.000000e+00> : vector<8x128xf32>
    %7 = vector.multi_reduction <add>, %6, %cst_5 [0] : vector<32x8x128xf32> to vector<8x128xf32>
    %c0_6 = arith.constant 0 : index
    %c0_7 = arith.constant 0 : index
    %8 = vector.load %arg3[%c0_6, %c0_7] : memref<8x128xf32, #tpu.memory_space<vmem>>, vector<8x128xf32>
    tpu.vector_store %arg3[%c0_6, %c0_7], %5 {strides = array<i32>} : memref<8x128xf32, #tpu.memory_space<vmem>>, vector<8x128xf32>,
    %c0_8 = arith.constant 0 : index
    %c0_9 = arith.constant 0 : index
    %9 = vector.load %arg4[%c0_8, %c0_9] : memref<8x128xf32, #tpu.memory_space<vmem>>, vector<8x128xf32>
    tpu.vector_store %arg4[%c0_8, %c0_9], %7 {strides = array<i32>} : memref<8x128xf32, #tpu.memory_space<vmem>>, vector<8x128xf32>,
    return
  }
  func.func @transform_0(%arg0: i32) -> (i32, i32, i32) {
    %c0_i32 = arith.constant 0 : i32
    %c0_i32_0 = arith.constant 0 : i32
    %c0_i32_1 = arith.constant 0 : i32
    return %c0_i32, %arg0, %c0_i32_0 : i32, i32, i32
  }
  func.func @transform_1(%arg0: i32) -> (i32, i32) {
    %c0_i32 = arith.constant 0 : i32
    %c0_i32_0 = arith.constant 0 : i32
    %c0_i32_1 = arith.constant 0 : i32
    return %c0_i32, %c0_i32_0 : i32, i32
  }
  func.func @transform_2(%arg0: i32) -> (i32, i32) {
    %c0_i32 = arith.constant 0 : i32
    %c0_i32_0 = arith.constant 0 : i32
    return %arg0, %c0_i32 : i32, i32
  }
  func.func @transform_3(%arg0: i32) -> (i32, i32) {
    %c0_i32 = arith.constant 0 : i32
    %c0_i32_0 = arith.constant 0 : i32
    return %arg0, %c0_i32 : i32, i32
  }
}

module attributes {stable_mosaic.version = 11 : i64} {
  func.func @conv_bn_relu_pool_kernel(%arg0: i32, %arg1: memref<1x1x128xf32, #tpu.memory_space<vmem>>, %arg2: memref<1x1x128xf32, #tpu.memory_space<vmem>>, %arg3: memref<4x64x36xbf16, #tpu.memory_space<vmem>>, %arg4: memref<36x128xbf16, #tpu.memory_space<vmem>>, %arg5: memref<64x128xf32, #tpu.memory_space<vmem>>) attributes {dimension_semantics = [#tpu.dimension_semantics<parallel>], iteration_bounds = array<i64: 2>, scalar_prefetch = 0 : i64, scratch_operands = 0 : i64, tpu.core_type = #tpu.core_type<tc>, window_params = [{pipeline_mode = #tpu.pipeline_mode<synchronous>, transform_indices = @transform_0, window_bounds = array<i64: 1, 1, 128>}, {pipeline_mode = #tpu.pipeline_mode<synchronous>, transform_indices = @transform_1, window_bounds = array<i64: 1, 1, 128>}, {transform_indices = @transform_2, window_bounds = array<i64: 4, 64, 36>}, {pipeline_mode = #tpu.pipeline_mode<synchronous>, transform_indices = @transform_3, window_bounds = array<i64: 36, 128>}, {transform_indices = @transform_4, window_bounds = array<i64: 64, 128>}]} {
    %c0 = arith.constant 0 : index
    %c0_0 = arith.constant 0 : index
    %c0_1 = arith.constant 0 : index
    %0 = vector.load %arg3[%c0, %c0_0, %c0_1] : memref<4x64x36xbf16, #tpu.memory_space<vmem>>, vector<4x64x36xbf16>
    %1 = vector.shape_cast %0 : vector<4x64x36xbf16> to vector<256x36xbf16>
    %c0_2 = arith.constant 0 : index
    %c0_3 = arith.constant 0 : index
    %2 = vector.load %arg4[%c0_2, %c0_3] : memref<36x128xbf16, #tpu.memory_space<vmem>>, vector<36x128xbf16>
    %cst = arith.constant dense<0.000000e+00> : vector<256x128xf32>
    %3 = tpu.matmul %1, %2, %cst {dimension_numbers = #tpu.dot_dimension_numbers<[1], [0], [0], [1], [0, 0, 1, 1], [], []>} : vector<256x36xbf16>, vector<36x128xbf16>, vector<256x128xf32> -> vector<256x128xf32>
    %4 = vector.shape_cast %3 : vector<256x128xf32> to vector<4x64x128xf32>
    %c0_4 = arith.constant 0 : index
    %c0_5 = arith.constant 0 : index
    %c0_6 = arith.constant 0 : index
    %5 = vector.load %arg1[%c0_4, %c0_5, %c0_6] : memref<1x1x128xf32, #tpu.memory_space<vmem>>, vector<1x1x128xf32>
    %6 = vector.broadcast %5 : vector<1x1x128xf32> to vector<4x64x128xf32>
    %7 = arith.mulf %4, %6 : vector<4x64x128xf32>
    %c0_7 = arith.constant 0 : index
    %c0_8 = arith.constant 0 : index
    %c0_9 = arith.constant 0 : index
    %8 = vector.load %arg2[%c0_7, %c0_8, %c0_9] : memref<1x1x128xf32, #tpu.memory_space<vmem>>, vector<1x1x128xf32>
    %9 = vector.broadcast %8 : vector<1x1x128xf32> to vector<4x64x128xf32>
    %10 = arith.addf %7, %9 : vector<4x64x128xf32>
    %cst_10 = arith.constant 0.000000e+00 : f32
    %11 = vector.broadcast %cst_10 : f32 to vector<4x64x128xf32>
    %12 = arith.maximumf %10, %11 : vector<4x64x128xf32>
    %cst_11 = arith.constant dense<0xFF800000> : vector<64x128xf32>
    %13 = vector.multi_reduction <maximumf>, %12, %cst_11 [0] : vector<4x64x128xf32> to vector<64x128xf32>
    %c0_12 = arith.constant 0 : index
    %c0_13 = arith.constant 0 : index
    %14 = vector.load %arg5[%c0_12, %c0_13] : memref<64x128xf32, #tpu.memory_space<vmem>>, vector<64x128xf32>
    tpu.vector_store %arg5[%c0_12, %c0_13], %13 {strides = array<i32>} : memref<64x128xf32, #tpu.memory_space<vmem>>, vector<64x128xf32>,
    return
  }
  func.func @transform_0(%arg0: i32) -> (i32, i32, i32) {
    %c0_i32 = arith.constant 0 : i32
    %c0_i32_0 = arith.constant 0 : i32
    %c0_i32_1 = arith.constant 0 : i32
    %c0_i32_2 = arith.constant 0 : i32
    return %c0_i32, %c0_i32_0, %c0_i32_1 : i32, i32, i32
  }
  func.func @transform_1(%arg0: i32) -> (i32, i32, i32) {
    %c0_i32 = arith.constant 0 : i32
    %c0_i32_0 = arith.constant 0 : i32
    %c0_i32_1 = arith.constant 0 : i32
    %c0_i32_2 = arith.constant 0 : i32
    return %c0_i32, %c0_i32_0, %c0_i32_1 : i32, i32, i32
  }
  func.func @transform_2(%arg0: i32) -> (i32, i32, i32) {
    %c0_i32 = arith.constant 0 : i32
    %c0_i32_0 = arith.constant 0 : i32
    %c0_i32_1 = arith.constant 0 : i32
    return %c0_i32, %arg0, %c0_i32_0 : i32, i32, i32
  }
  func.func @transform_3(%arg0: i32) -> (i32, i32) {
    %c0_i32 = arith.constant 0 : i32
    %c0_i32_0 = arith.constant 0 : i32
    %c0_i32_1 = arith.constant 0 : i32
    return %c0_i32, %c0_i32_0 : i32, i32
  }
  func.func @transform_4(%arg0: i32) -> (i32, i32) {
    %c0_i32 = arith.constant 0 : i32
    %c0_i32_0 = arith.constant 0 : i32
    return %arg0, %c0_i32 : i32, i32
  }
}

</mosaic_0001>

<llo_original>
// kernel: cnn_block_forward.2
$region0: #{cnn_block_forward.2}
  #allocation0 [shape = 'u32[]', space=smem, size = 0x4, offset = 0x4, fixed_abs, tag = 'smem constant byte address 0x4 - core index']
  #allocation1 [shape = 'u32[144,128]{1,0:T(1,128)}', space=vmem, size = 0x12000, scoped, tag = 'internal scratch']
  %s0 = inlined_call_operand.vmem [shape: bf16[4,128,36], index: 0, kind: input, shape index: {}]
  %s1 = inlined_call_operand.vmem [shape: bf16[36,128], index: 1, kind: input, shape index: {}]
  %s2 = inlined_call_operand.vmem [shape: f32[16,128], index: 2, kind: output, shape index: {0}]
  %s3 = inlined_call_operand.vmem [shape: f32[16,128], index: 3, kind: output, shape index: {1}]
  %4 = xla_tuple %s2, %s3
  %s5 = sld [smem:[#allocation0]]
  $region90: #{cnn_block_forward.2} parent=0
    _
  %s7 = ssub.s32 1, %s5
  %s8 = scalar_select 0, %s7, %s5
  $region1: #{cnn_block_forward.2} parent=0
    #allocation2 [shape = 'u8[131072]{0}', space=vmem, size = 0x20000, scoped, tag = 'input window, operand 0']
    loop: start=0, step=1, limit=4
    $region2: #{cnn_block_forward.2} parent=1 // loop_pre_header
      _
    $region3: #{cnn_block_forward.2} parent=1 // loop_header
      %s10 = sphi 0, %s14
      %p11 = scmp.ge.s32.totalorder %s10, 4
      %s20 = sphi 0, %s22
      %s23 = sphi 0, %s20
      %s24 = sphi 0, %s23
      %s40 = sphi 0, %s24
      %s44 = sphi 0, %s44
      %s46 = sphi 0, %s44
      %s47 = sphi 0, %s46
      %s61 = sphi 0, %s47
      %s67 = sphi 0, %s69
      %s70 = sphi 0, %s67
      %s71 = sphi 0, %s70
      %s87 = sphi 0, %s71
      %s93 = sphi 0, %s95
      %s96 = sphi 0, %s93
      %s97 = sphi 0, %s96
      %s113 = sphi 0, %s97
    $region4: #{cnn_block_forward.2} parent=1 // loop_header_branch
      %13 = sbr.rel (%p11) target = $region8
    $region5: #{cnn_block_forward.2} parent=1 // loop_body
      %s15 = ssub.s32 %s10, 1
      %s16 = ssub.s32 %s10, 2
      %s17 = sadd.s32 %s10, 1
      %s18 = ssub.s32 %s10, %s17
      %p19 = scmp.eq.s32.totalorder %s18, 0
      %s21 = sadd.s32 %s20, 1
      %s22 = scalar_select %p19, %s20, %s21
      %p25 = pneg %p19
      %p26 = scmp.eq.s32.totalorder %s10, 1
      %p27 = por %p25, %p26
      %p28 = scmp.ne.s32.totalorder %s20, %s23
      %p29 = scmp.eq.s32.totalorder %s10, 0
      %p30 = por %p28, %p29
      %p31 = scmp.ne.s32.totalorder %s20, %s23
      %p32 = scmp.eq.s32.totalorder %s15, 1
      %p33 = por %p31, %p32
      %p34 = scmp.ne.s32.totalorder %s23, %s24
      %p35 = scmp.eq.s32.totalorder %s15, 0
      %p36 = por %p34, %p35
      %p37 = scmp.ne.s32.totalorder %s23, %s24
      %p38 = scmp.eq.s32.totalorder %s16, 1
      %p39 = por %p37, %p38
      %p41 = scmp.ne.s32.totalorder %s24, %s40
      %p42 = scmp.eq.s32.totalorder %s16, 0
      %p43 = por %p41, %p42
      %s45 = sadd.s32 %s44, 1
      %p48 = scmp.eq.s32.totalorder %s10, 1
      %p49 = scmp.ne.s32.totalorder %s44, %s46
      %p50 = scmp.eq.s32.totalorder %s10, 0
      %p51 = por %p49, %p50
      %p52 = scmp.ne.s32.totalorder %s44, %s46
      %p53 = scmp.eq.s32.totalorder %s15, 1
      %p54 = por %p52, %p53
      %p55 = scmp.ne.s32.totalorder %s46, %s47
      %p56 = scmp.eq.s32.totalorder %s15, 0
      %p57 = por %p55, %p56
      %p58 = scmp.ne.s32.totalorder %s46, %s47
      %p59 = scmp.eq.s32.totalorder %s16, 1
      %p60 = por %p58, %p59
      %p62 = scmp.ne.s32.totalorder %s47, %s61
      %p63 = scmp.eq.s32.totalorder %s16, 0
      %p64 = por %p62, %p63
      %s65 = ssub.s32 %s10, %s17
      %p66 = scmp.eq.s32.totalorder %s65, 0
      %s68 = sadd.s32 %s67, 1
      %s69 = scalar_select %p66, %s67, %s68
      %p72 = pneg %p66
      %p73 = scmp.eq.s32.totalorder %s10, 1
      %p74 = por %p72, %p73
      %p75 = scmp.ne.s32.totalorder %s67, %s70
      %p76 = scmp.eq.s32.totalorder %s10, 0
      %p77 = por %p75, %p76
      %p78 = scmp.ne.s32.totalorder %s67, %s70
      %p79 = scmp.eq.s32.totalorder %s15, 1
      %p80 = por %p78, %p79
      %p81 = scmp.ne.s32.totalorder %s70, %s71
      %p82 = scmp.eq.s32.totalorder %s15, 0
      %p83 = por %p81, %p82
      %p84 = scmp.ne.s32.totalorder %s70, %s71
      %p85 = scmp.eq.s32.totalorder %s16, 1
      %p86 = por %p84, %p85
      %p88 = scmp.ne.s32.totalorder %s71, %s87
      %p89 = scmp.eq.s32.totalorder %s16, 0
      %p90 = por %p88, %p89
      %s91 = ssub.s32 %s10, %s17
      %p92 = scmp.eq.s32.totalorder %s91, 0
      %s94 = sadd.s32 %s93, 1
      %s95 = scalar_select %p92, %s93, %s94
      %p98 = pneg %p92
      %p99 = scmp.eq.s32.totalorder %s10, 1
      %p100 = por %p98, %p99
      %p101 = scmp.ne.s32.totalorder %s93, %s96
      %p102 = scmp.eq.s32.totalorder %s10, 0
      %p103 = por %p101, %p102
      %p104 = scmp.ne.s32.totalorder %s93, %s96
      %p105 = scmp.eq.s32.totalorder %s15, 1
      %p106 = por %p104, %p105
      %p107 = scmp.ne.s32.totalorder %s96, %s97
      %p108 = scmp.eq.s32.totalorder %s15, 0
      %p109 = por %p107, %p108
      %p110 = scmp.ne.s32.totalorder %s96, %s97
      %p111 = scmp.eq.s32.totalorder %s16, 1
      %p112 = por %p110, %p111
      %p114 = scmp.ne.s32.totalorder %s97, %s113
      %p115 = scmp.eq.s32.totalorder %s16, 0
      %p116 = por %p114, %p115
      %p117 = scmp.le.s32.totalorder 1, %s10
      %p118 = scmp.lt.s32.totalorder %s10, 3
      %p119 = pnand %p117, %p118
      %p120 = pneg %p119
      // Predicated region
      $region9: #{cnn_block_forward.2} parent=5 // pred_check
        _
      $region10: #{cnn_block_forward.2} parent=5 // pred_check_branch
        %122 = sbr.rel (%p119) target = $region12
      $region11: #{cnn_block_forward.2} parent=5 // pred_region
        %s123 = ssub.s32 %s10, 1
        // Predicated region
        $region13: #{cnn_block_forward.2} parent=11 // pred_check
          %p124 = pneg %p57
        $region14: #{cnn_block_forward.2} parent=11 // pred_check_branch
          %126 = sbr.rel (%p124) target = $region16
        $region15: #{cnn_block_forward.2} parent=11 // pred_region
          _
        $region16: #{cnn_block_forward.2} parent=11 // pred_fallthru
          _
      $region12: #{cnn_block_forward.2} parent=5 // pred_fallthru
        _
      %p127 = scmp.lt.s32.totalorder %s10, 2
      // Predicated region
      $region17: #{cnn_block_forward.2} parent=5 // pred_check
        %p128 = pneg %p127
      $region18: #{cnn_block_forward.2} parent=5 // pred_check_branch
        %130 = sbr.rel (%p128) target = $region20
      $region19: #{cnn_block_forward.2} parent=5 // pred_region
        // Predicated region
        $region21: #{cnn_block_forward.2} parent=19 // pred_check
          %p131 = pneg %p30
        $region22: #{cnn_block_forward.2} parent=19 // pred_check_branch
          %133 = sbr.rel (%p131) target = $region24
        $region23: #{cnn_block_forward.2} parent=19 // pred_region
          %s134 = sand.u32 %s20, 1
          %s135 = sand.u32 %s20, 1
          %s136 = smul.addr %s135, 128
          %s137 = scalar_lea.vmem [#allocation2], %s136
          %s138 = smul.u32 8, %s10
          %s139 = smul.addr %s138, 4
          %s140 = scalar_lea.vmem %s0, %s139
          // Predicated region
          $region25: #{cnn_block_forward.2} parent=23 // pred_check
            _
          $region26: #{cnn_block_forward.2} parent=23 // pred_check_branch
            %142 = sbr.rel (0) target = $region28
          $region27: #{cnn_block_forward.2} parent=23 // pred_region
            // Predicated region
            $region29: #{cnn_block_forward.2} parent=27 // pred_check
              _
            $region30: #{cnn_block_forward.2} parent=27 // pred_check_branch
              %144 = sbr.rel target = $region32
            $region31: #{cnn_block_forward.2} parent=27 // pred_region
              // Predicated region
              $region44: #{cnn_block_forward.2} parent=31 // pred_check
                _
              $region45: #{cnn_block_forward.2} parent=31 // pred_check_branch
                %221 = sbr.rel (0) target = $region47
              $region46: #{cnn_block_forward.2} parent=31 // pred_region
                loop: start=0, step=1, limit=1
                $region48: #{cnn_block_forward.2} parent=46 // loop_pre_header
                  _
                $region49: #{cnn_block_forward.2} parent=46 // loop_header
                  %s223 = sphi 0, %s227
                  %p224 = scmp.ge.s32.totalorder %s223, 1
                  %s228 = sphi %s140, %s140
                  %s229 = sphi %s137, %s137
                $region50: #{cnn_block_forward.2} parent=46 // loop_header_branch
                  %226 = sbr.rel (%p224) target = $region54
                $region51: #{cnn_block_forward.2} parent=46 // loop_body
                  _
                $region52: #{cnn_block_forward.2} parent=46 // loop_footer
                  %s227 = sadd.s32 1, %s223
                $region53: #{cnn_block_forward.2} parent=46 // loop_footer_branch
                  %222 = sbr.rel target = $region49
                $region54: #{cnn_block_forward.2} parent=46 // loop_exit
                  _
                loop: start=0, step=1, limit=1
                $region55: #{cnn_block_forward.2} parent=46 // loop_pre_header
                  _
                $region56: #{cnn_block_forward.2} parent=46 // loop_header
                  %s232 = sphi 0, %s236
                  %p233 = scmp.ge.s32.totalorder %s232, 1
                  %s237 = sphi %s140, %s140
                  %s238 = sphi %s137, %s137
                $region57: #{cnn_block_forward.2} parent=46 // loop_header_branch
                  %235 = sbr.rel (%p233) target = $region61
                $region58: #{cnn_block_forward.2} parent=46 // loop_body
                  %v239 = vld [vmem:[%s237] sm:$0xf]
                  %240 = vst [vmem:[%s238] sm:$0xf] %v239
                  %v241 = vld [vmem:[%s237 + $0x4] sm:$0xf]
                  %242 = vst [vmem:[%s238 + $0x4] sm:$0xf] %v241
                  %v243 = vld [vmem:[%s237 + $0x8] sm:$0xf]
                  %244 = vst [vmem:[%s238 + $0x8] sm:$0xf] %v243
                  %v245 = vld [vmem:[%s237 + $0xc] sm:$0xf]
                  %246 = vst [vmem:[%s238 + $0xc] sm:$0xf] %v245
                  %v247 = vld [vmem:[%s237 + $0x10] sm:$0xf]
                  %248 = vst [vmem:[%s238 + $0x10] sm:$0xf] %v247
                  %v249 = vld [vmem:[%s237 + $0x14] sm:$0xf]
                  %250 = vst [vmem:[%s238 + $0x14] sm:$0xf] %v249
                  %v251 = vld [vmem:[%s237 + $0x18] sm:$0xf]
                  %252 = vst [vmem:[%s238 + $0x18] sm:$0xf] %v251
                  %v253 = vld [vmem:[%s237 + $0x1c] sm:$0xf]
                  %254 = vst [vmem:[%s238 + $0x1c] sm:$0xf] %v253
                  %v255 = vld [vmem:[%s237 + $0x40] sm:$0xf]
                  %256 = vst [vmem:[%s238 + $0x20] sm:$0xf] %v255
                  %v257 = vld [vmem:[%s237 + $0x44] sm:$0xf]
                  %258 = vst [vmem:[%s238 + $0x24] sm:$0xf] %v257
                  %v259 = vld [vmem:[%s237 + $0x48] sm:$0xf]
                  %260 = vst [vmem:[%s238 + $0x28] sm:$0xf] %v259
                  %v261 = vld [vmem:[%s237 + $0x4c] sm:$0xf]
                  %262 = vst [vmem:[%s238 + $0x2c] sm:$0xf] %v261
                  %v263 = vld [vmem:[%s237 + $0x50] sm:$0xf]
                  %264 = vst [vmem:[%s238 + $0x30] sm:$0xf] %v263
                  %v265 = vld [vmem:[%s237 + $0x54] sm:$0xf]
                  %266 = vst [vmem:[%s238 + $0x34] sm:$0xf] %v265
                  %v267 = vld [vmem:[%s237 + $0x58] sm:$0xf]
                  %268 = vst [vmem:[%s238 + $0x38] sm:$0xf] %v267
                  %v269 = vld [vmem:[%s237 + $0x5c] sm:$0xf]
                  %270 = vst [vmem:[%s238 + $0x3c] sm:$0xf] %v269
                  %v271 = vld [vmem:[%s237 + $0x80] sm:$0xf]
                  %272 = vst [vmem:[%s238 + $0x40] sm:$0xf] %v271
                  %v273 = vld [vmem:[%s237 + $0x84] sm:$0xf]
                  %274 = vst [vmem:[%s238 + $0x44] sm:$0xf] %v273
                  %v275 = vld [vmem:[%s237 + $0x88] sm:$0xf]
                  %276 = vst [vmem:[%s238 + $0x48] sm:$0xf] %v275
                  %v277 = vld [vmem:[%s237 + $0x8c] sm:$0xf]
                  %278 = vst [vmem:[%s238 + $0x4c] sm:$0xf] %v277
                  %v279 = vld [vmem:[%s237 + $0x90] sm:$0xf]
                  %280 = vst [vmem:[%s238 + $0x50] sm:$0xf] %v279
                  %v281 = vld [vmem:[%s237 + $0x94] sm:$0xf]
                  %282 = vst [vmem:[%s238 + $0x54] sm:$0xf] %v281
                  %v283 = vld [vmem:[%s237 + $0x98] sm:$0xf]
                  %284 = vst [vmem:[%s238 + $0x58] sm:$0xf] %v283
                  %v285 = vld [vmem:[%s237 + $0x9c] sm:$0xf]
                  %286 = vst [vmem:[%s238 + $0x5c] sm:$0xf] %v285
                  %v287 = vld [vmem:[%s237 + $0xc0] sm:$0xf]
                  %288 = vst [vmem:[%s238 + $0x60] sm:$0xf] %v287
                  %v289 = vld [vmem:[%s237 + $0xc4] sm:$0xf]
                  %290 = vst [vmem:[%s238 + $0x64] sm:$0xf] %v289
                  %v291 = vld [vmem:[%s237 + $0xc8] sm:$0xf]
                  %292 = vst [vmem:[%s238 + $0x68] sm:$0xf] %v291
                  %v293 = vld [vmem:[%s237 + $0xcc] sm:$0xf]
                  %294 = vst [vmem:[%s238 + $0x6c] sm:$0xf] %v293
                  %v295 = vld [vmem:[%s237 + $0xd0] sm:$0xf]
                  %296 = vst [vmem:[%s238 + $0x70] sm:$0xf] %v295
                  %v297 = vld [vmem:[%s237 + $0xd4] sm:$0xf]
                  %298 = vst [vmem:[%s238 + $0x74] sm:$0xf] %v297
                  %v299 = vld [vmem:[%s237 + $0xd8] sm:$0xf]
                  %300 = vst [vmem:[%s238 + $0x78] sm:$0xf] %v299
                  %v301 = vld [vmem:[%s237 + $0xdc] sm:$0xf]
                  %302 = vst [vmem:[%s238 + $0x7c] sm:$0xf] %v301
                $region59: #{cnn_block_forward.2} parent=46 // loop_footer
                  %s236 = sadd.s32 1, %s232
                $region60: #{cnn_block_forward.2} parent=46 // loop_footer_branch
                  %231 = sbr.rel target = $region56
                $region61: #{cnn_block_forward.2} parent=46 // loop_exit
                  _
              $region47: #{cnn_block_forward.2} parent=31 // pred_fallthru
                _
            $region32: #{cnn_block_forward.2} parent=27 // pred_fallthru
              _
            // Predicated region
            $region33: #{cnn_block_forward.2} parent=27 // pred_check
              _
            $region34: #{cnn_block_forward.2} parent=27 // pred_check_branch
              %146 = sbr.rel (0) target = $region36
            $region35: #{cnn_block_forward.2} parent=27 // pred_region
              loop: start=0, step=1, limit=1
              $region37: #{cnn_block_forward.2} parent=35 // loop_pre_header
                _
              $region38: #{cnn_block_forward.2} parent=35 // loop_header
                %s149 = sphi 0, %s153
                %p150 = scmp.ge.s32.totalorder %s149, 1
                %s154 = sphi %s140, %s140
                %s155 = sphi %s137, %s137
              $region39: #{cnn_block_forward.2} parent=35 // loop_header_branch
                %152 = sbr.rel (%p150) target = $region43
              $region40: #{cnn_block_forward.2} parent=35 // loop_body
                %v156 = vld [vmem:[%s154] sm:$0xf]
                %157 = vst [vmem:[%s155] sm:$0xf] %v156
                %v158 = vld [vmem:[%s154 + $0x4] sm:$0xf]
                %159 = vst [vmem:[%s155 + $0x4] sm:$0xf] %v158
                %v160 = vld [vmem:[%s154 + $0x8] sm:$0xf]
                %161 = vst [vmem:[%s155 + $0x8] sm:$0xf] %v160
                %v162 = vld [vmem:[%s154 + $0xc] sm:$0xf]
                %163 = vst [vmem:[%s155 + $0xc] sm:$0xf] %v162
                %v164 = vld [vmem:[%s154 + $0x10] sm:$0xf]
                %165 = vst [vmem:[%s155 + $0x10] sm:$0xf] %v164
                %v166 = vld [vmem:[%s154 + $0x14] sm:$0xf]
                %167 = vst [vmem:[%s155 + $0x14] sm:$0xf] %v166
                %v168 = vld [vmem:[%s154 + $0x18] sm:$0xf]
                %169 = vst [vmem:[%s155 + $0x18] sm:$0xf] %v168
                %v170 = vld [vmem:[%s154 + $0x1c] sm:$0xf]
                %171 = vst [vmem:[%s155 + $0x1c] sm:$0xf] %v170
                %v172 = vld [vmem:[%s154 + $0x40] sm:$0xf]
                %173 = vst [vmem:[%s155 + $0x20] sm:$0xf] %v172
                %v174 = vld [vmem:[%s154 + $0x44] sm:$0xf]
                %175 = vst [vmem:[%s155 + $0x24] sm:$0xf] %v174
                %v176 = vld [vmem:[%s154 + $0x48] sm:$0xf]
                %177 = vst [vmem:[%s155 + $0x28] sm:$0xf] %v176
                %v178 = vld [vmem:[%s154 + $0x4c] sm:$0xf]
                %179 = vst [vmem:[%s155 + $0x2c] sm:$0xf] %v178
                %v180 = vld [vmem:[%s154 + $0x50] sm:$0xf]
                %181 = vst [vmem:[%s155 + $0x30] sm:$0xf] %v180
                %v182 = vld [vmem:[%s154 + $0x54] sm:$0xf]
                %183 = vst [vmem:[%s155 + $0x34] sm:$0xf] %v182
                %v184 = vld [vmem:[%s154 + $0x58] sm:$0xf]
                %185 = vst [vmem:[%s155 + $0x38] sm:$0xf] %v184
                %v186 = vld [vmem:[%s154 + $0x5c] sm:$0xf]
                %187 = vst [vmem:[%s155 + $0x3c] sm:$0xf] %v186
                %v188 = vld [vmem:[%s154 + $0x80] sm:$0xf]
                %189 = vst [vmem:[%s155 + $0x40] sm:$0xf] %v188
                %v190 = vld [vmem:[%s154 + $0x84] sm:$0xf]
                %191 = vst [vmem:[%s155 + $0x44] sm:$0xf] %v190
                %v192 = vld [vmem:[%s154 + $0x88] sm:$0xf]
                %193 = vst [vmem:[%s155 + $0x48] sm:$0xf] %v192
                %v194 = vld [vmem:[%s154 + $0x8c] sm:$0xf]
                %195 = vst [vmem:[%s155 + $0x4c] sm:$0xf] %v194
                %v196 = vld [vmem:[%s154 + $0x90] sm:$0xf]
                %197 = vst [vmem:[%s155 + $0x50] sm:$0xf] %v196
                %v198 = vld [vmem:[%s154 + $0x94] sm:$0xf]
                %199 = vst [vmem:[%s155 + $0x54] sm:$0xf] %v198
                %v200 = vld [vmem:[%s154 + $0x98] sm:$0xf]
                %201 = vst [vmem:[%s155 + $0x58] sm:$0xf] %v200
                %v202 = vld [vmem:[%s154 + $0x9c] sm:$0xf]
                %203 = vst [vmem:[%s155 + $0x5c] sm:$0xf] %v202
                %v204 = vld [vmem:[%s154 + $0xc0] sm:$0xf]
                %205 = vst [vmem:[%s155 + $0x60] sm:$0xf] %v204
                %v206 = vld [vmem:[%s154 + $0xc4] sm:$0xf]
                %207 = vst [vmem:[%s155 + $0x64] sm:$0xf] %v206
                %v208 = vld [vmem:[%s154 + $0xc8] sm:$0xf]
                %209 = vst [vmem:[%s155 + $0x68] sm:$0xf] %v208
                %v210 = vld [vmem:[%s154 + $0xcc] sm:$0xf]
                %211 = vst [vmem:[%s155 + $0x6c] sm:$0xf] %v210
                %v212 = vld [vmem:[%s154 + $0xd0] sm:$0xf]
                %213 = vst [vmem:[%s155 + $0x70] sm:$0xf] %v212
                %v214 = vld [vmem:[%s154 + $0xd4] sm:$0xf]
                %215 = vst [vmem:[%s155 + $0x74] sm:$0xf] %v214
                %v216 = vld [vmem:[%s154 + $0xd8] sm:$0xf]
                %217 = vst [vmem:[%s155 + $0x78] sm:$0xf] %v216
                %v218 = vld [vmem:[%s154 + $0xdc] sm:$0xf]
                %219 = vst [vmem:[%s155 + $0x7c] sm:$0xf] %v218
              $region41: #{cnn_block_forward.2} parent=35 // loop_footer
                %s153 = sadd.s32 1, %s149
              $region42: #{cnn_block_forward.2} parent=35 // loop_footer_branch
                %148 = sbr.rel target = $region38
              $region43: #{cnn_block_forward.2} parent=35 // loop_exit
                _
            $region36: #{cnn_block_forward.2} parent=27 // pred_fallthru
              _
          $region28: #{cnn_block_forward.2} parent=23 // pred_fallthru
            _
          %303 = vnop
        $region24: #{cnn_block_forward.2} parent=19 // pred_fallthru
          _
      $region20: #{cnn_block_forward.2} parent=5 // pred_fallthru
        _
      %p304 = scmp.le.s32.totalorder 1, %s10
      %p305 = scmp.lt.s32.totalorder %s10, 3
      %p306 = pnand %p304, %p305
      %p307 = pneg %p306
      // Predicated region
      $region62: #{cnn_block_forward.2} parent=5 // pred_check
        _
      $region63: #{cnn_block_forward.2} parent=5 // pred_check_branch
        %309 = sbr.rel (%p306) target = $region65
      $region64: #{cnn_block_forward.2} parent=5 // pred_region
        %s310 = ssub.s32 %s10, 1
        %s311 = sand.u32 %s23, 1
        %s312 = sand.u32 %s23, 1
        %s313 = smul.addr %s312, 128
        %s314 = scalar_lea.vmem [#allocation2], %s313
        // Predicated region
        $region66: #{cnn_block_forward.2} parent=64 // pred_check
          %p315 = pneg %p36
        $region67: #{cnn_block_forward.2} parent=64 // pred_check_branch
          %317 = sbr.rel (%p315) target = $region69
        $region68: #{cnn_block_forward.2} parent=64 // pred_region
          _
        $region69: #{cnn_block_forward.2} parent=64 // pred_fallthru
          _
        %s318 = sand.u32 %s23, 1
        %s319 = sand.u32 %s23, 1
        %s320 = smul.addr %s319, 128
        %s321 = scalar_lea.vmem [#allocation2], %s320
        %p322 = pneg %p36
        %p323 = pneg %p33
        %p324 = pneg %p57
        %p325 = pneg %p54
        %p326 = pneg %p83
        %p327 = pneg %p80
        %p328 = scmp.lt.s32.totalorder %s15, 1
        %s329 = scalar_select %p328, %s15, 1
        %s330 = smul.addr %s329, 8
        %s331 = scalar_lea.vmem %s2, %s330
        %p332 = pneg %p109
        %p333 = pneg %p106
        %p334 = scmp.lt.s32.totalorder %s15, 1
        %s335 = scalar_select %p334, %s15, 1
        %s336 = smul.addr %s335, 8
        %s337 = scalar_lea.vmem %s3, %s336
        %s338 = smul.u32 8, %s15
        %p339 = scmp.lt.s32.totalorder %s15, 1
        %s340 = scalar_select %p339, %s15, 1
        %s341 = smul.addr %s340, 8
        %s342 = scalar_lea.vmem %s2, %s341
        %p343 = scmp.lt.s32.totalorder %s15, 1
        %s344 = scalar_select %p343, %s15, 1
        %s345 = smul.addr %s344, 8
        %s346 = scalar_lea.vmem %s3, %s345
        %v348 = vld [vmem:[%s314] sm:$0xf]
        %v349 = vld [vmem:[%s314 + $0x4] sm:$0xf]
        %v350 = vld [vmem:[%s314 + $0x8] sm:$0xf]
        %v351 = vld [vmem:[%s314 + $0xc] sm:$0xf]
        %v352 = vld [vmem:[%s314 + $0x10] sm:$0xf]
        %v353 = vld [vmem:[%s314 + $0x14] sm:$0xf]
        %v354 = vld [vmem:[%s314 + $0x18] sm:$0xf]
        %v355 = vld [vmem:[%s314 + $0x1c] sm:$0xf]
        %v356 = vld [vmem:[%s314 + $0x20] sm:$0xf]
        %v357 = vld [vmem:[%s314 + $0x24] sm:$0xf]
        %v358 = vld [vmem:[%s314 + $0x28] sm:$0xf]
        %v359 = vld [vmem:[%s314 + $0x2c] sm:$0xf]
        %v360 = vld [vmem:[%s314 + $0x30] sm:$0xf]
        %v361 = vld [vmem:[%s314 + $0x34] sm:$0xf]
        %v362 = vld [vmem:[%s314 + $0x38] sm:$0xf]
        %v363 = vld [vmem:[%s314 + $0x3c] sm:$0xf]
        %v364 = vld [vmem:[%s314 + $0x40] sm:$0xf]
        %v365 = vld [vmem:[%s314 + $0x44] sm:$0xf]
        %v366 = vld [vmem:[%s314 + $0x48] sm:$0xf]
        %v367 = vld [vmem:[%s314 + $0x4c] sm:$0xf]
        %v368 = vld [vmem:[%s314 + $0x50] sm:$0xf]
        %v369 = vld [vmem:[%s314 + $0x54] sm:$0xf]
        %v370 = vld [vmem:[%s314 + $0x58] sm:$0xf]
        %v371 = vld [vmem:[%s314 + $0x5c] sm:$0xf]
        %v372 = vld [vmem:[%s314 + $0x60] sm:$0xf]
        %v373 = vld [vmem:[%s314 + $0x64] sm:$0xf]
        %v374 = vld [vmem:[%s314 + $0x68] sm:$0xf]
        %v375 = vld [vmem:[%s314 + $0x6c] sm:$0xf]
        %v376 = vld [vmem:[%s314 + $0x70] sm:$0xf]
        %v377 = vld [vmem:[%s314 + $0x74] sm:$0xf]
        %v378 = vld [vmem:[%s314 + $0x78] sm:$0xf]
        %v379 = vld [vmem:[%s314 + $0x7c] sm:$0xf]
        %v380 = vld [vmem:[%s1] sm:$0xf]
        %v381 = vld [vmem:[%s1 + $0x4] sm:$0xf]
        %v382 = vld [vmem:[%s1 + $0x8] sm:$0xf]
        %v383 = vld [vmem:[%s1 + $0xc] sm:$0xf]
        %v384 = vld [vmem:[%s1 + $0x10] sm:$0x3]
        %v417 = vunpack.c.l.b16 %v348
        %v418 = vunpack.c.l.b16 %v349
        %v419 = vunpack.c.l.b16 %v350
        %v420 = vunpack.c.l.b16 %v351
        %v421 = vunpack.c.l.b16 %v352
        %v422 = vunpack.c.l.b16 %v353
        %v423 = vunpack.c.l.b16 %v354
        %v424 = vunpack.c.l.b16 %v355
        %v425 = vunpack.c.l.b16 %v356
        %v426 = vunpack.c.l.b16 %v357
        %v427 = vunpack.c.l.b16 %v358
        %v428 = vunpack.c.l.b16 %v359
        %v429 = vunpack.c.l.b16 %v360
        %v430 = vunpack.c.l.b16 %v361
        %v431 = vunpack.c.l.b16 %v362
        %v432 = vunpack.c.l.b16 %v363
        %v433 = vunpack.c.l.b16 %v364
        %v434 = vunpack.c.l.b16 %v365
        %v435 = vunpack.c.l.b16 %v366
        %v436 = vunpack.c.l.b16 %v367
        %v437 = vunpack.c.l.b16 %v368
        %v438 = vunpack.c.l.b16 %v369
        %v439 = vunpack.c.l.b16 %v370
        %v440 = vunpack.c.l.b16 %v371
        %v441 = vunpack.c.l.b16 %v372
        %v442 = vunpack.c.l.b16 %v373
        %v443 = vunpack.c.l.b16 %v374
        %v444 = vunpack.c.l.b16 %v375
        %v445 = vunpack.c.l.b16 %v376
        %v446 = vunpack.c.l.b16 %v377
        %v447 = vunpack.c.l.b16 %v378
        %v448 = vunpack.c.l.b16 %v379
        %v449 = vpack.c.b16 %v418, %v417
        %v450 = vpack.c.b16 %v420, %v419
        %v451 = vpack.c.b16 %v422, %v421
        %v452 = vpack.c.b16 %v424, %v423
        %v453 = vpack.c.b16 %v426, %v425
        %v454 = vpack.c.b16 %v428, %v427
        %v455 = vpack.c.b16 %v430, %v429
        %v456 = vpack.c.b16 %v432, %v431
        %v457 = vpack.c.b16 %v434, %v433
        %v458 = vpack.c.b16 %v436, %v435
        %v459 = vpack.c.b16 %v438, %v437
        %v460 = vpack.c.b16 %v440, %v439
        %v461 = vpack.c.b16 %v442, %v441
        %v462 = vpack.c.b16 %v444, %v443
        %v463 = vpack.c.b16 %v446, %v445
        %v464 = vpack.c.b16 %v448, %v447
        %v470 = vunpack.c.l.b16 %v380
        %v471 = vunpack.c.l.b16 %v381
        %v472 = vunpack.c.l.b16 %v382
        %v473 = vunpack.c.l.b16 %v383
        %v474 = vunpack.c.l.b16 %v384
        %v475 = vpack.c.b16 %v471, %v470
        %v476 = vpack.c.b16 %v473, %v472
        %v477 = vpack.c.b16 %v474, %v474
        %vm480 = vcmask 293888
        %v482 = vsel %vm480, %v449, 0
        %v485 = vsel %vm480, %v450, 0
        %v488 = vsel %vm480, %v451, 0
        %v491 = vsel %vm480, %v452, 0
        %v494 = vsel %vm480, %v453, 0
        %v497 = vsel %vm480, %v454, 0
        %v500 = vsel %vm480, %v455, 0
        %v503 = vsel %vm480, %v456, 0
        %v506 = vsel %vm480, %v457, 0
        %v509 = vsel %vm480, %v458, 0
        %v512 = vsel %vm480, %v459, 0
        %v515 = vsel %vm480, %v460, 0
        %v518 = vsel %vm480, %v461, 0
        %v521 = vsel %vm480, %v462, 0
        %v524 = vsel %vm480, %v463, 0
        %v527 = vsel %vm480, %v464, 0
        %vm529 = vcmask 1041408
        %v531 = vsel %vm529, %v477, 0
        %533 = vmatprep.subr.bf16.mxu0 0
        %534 = vmatpush1.bf16.msra.mxu0 %v475
        %535 = vmatprep.subr.bf16.mxu0 0
        %536 = vmatpush1.bf16.msra.mxu0 %v476
        %537 = vmatprep.subr.bf16.mxu0 0
        %538 = vmatpush1.bf16.msra.mxu0 %v531
        %539 = vmatprep.subr.bf16.mxu0 0
        %540 = vmatpush1.bf16.msra.mxu0 0
        %541 = vmatprep.subr.bf16.mxu0 0
        %542 = vmatpush1.bf16.msra.mxu0 0
        %543 = vmatprep.subr.bf16.mxu0 0
        %544 = vmatpush1.bf16.msra.mxu0 0
        %545 = vmatprep.subr.bf16.mxu0 0
        %546 = vmatpush1.bf16.msra.mxu0 0
        %547 = vmatprep.subr.bf16.mxu0 0
        %548 = vmatpush1.bf16.msra.mxu0 0
        %549 = vmatprep.subr.bf16.mxu0 0
        %550 = vmatpush1.bf16.msra.mxu0 0
        %551 = vmatprep.subr.bf16.mxu0 0
        %552 = vmatpush1.bf16.msra.mxu0 0
        %553 = vmatprep.subr.bf16.mxu0 0
        %554 = vmatpush1.bf16.msra.mxu0 0
        %555 = vmatprep.subr.bf16.mxu0 0
        %556 = vmatpush1.bf16.msra.mxu0 0
        %557 = vmatprep.subr.bf16.mxu0 0
        %558 = vmatpush1.bf16.msra.mxu0 0
        %559 = vmatprep.subr.bf16.mxu0 0
        %560 = vmatpush1.bf16.msra.mxu0 0
        %561 = vmatprep.subr.bf16.mxu0 0
        %562 = vmatpush1.bf16.msra.mxu0 0
        %563 = vmatprep.subr.bf16.mxu0 0
        %564 = vmatpush1.bf16.msra.mxu0 0
        %565 = vmatprep.mubr.bf16.mxu0 0
        %566 = vmatmul.mubr.bf16.gmra.mrb[0].mxu0 %v482
        %v567 = vpop.f32.mrb[0].mxu0
        %v568 = vadd.f32 0.0, %v567
        %v569 = vpop.f32.mrb[0].mxu0
        %v570 = vpop.f32.mrb[0].mxu0
        %v571 = vadd.f32 0.0, %v570
        %v572 = vpop.f32.mrb[0].mxu0
        %573 = vmatprep.mubr.bf16.mxu0 0
        %574 = vmatmul.mubr.bf16.gmra.mrb[0].mxu0 %v485
        %v575 = vpop.f32.mrb[0].mxu0
        %v576 = vadd.f32 0.0, %v575
        %v577 = vpop.f32.mrb[0].mxu0
        %v578 = vpop.f32.mrb[0].mxu0
        %v579 = vadd.f32 0.0, %v578
        %v580 = vpop.f32.mrb[0].mxu0
        %581 = vmatprep.mubr.bf16.mxu0 0
        %582 = vmatmul.mubr.bf16.gmra.mrb[0].mxu0 %v488
        %v583 = vpop.f32.mrb[0].mxu0
        %v584 = vadd.f32 0.0, %v583
        %v585 = vpop.f32.mrb[0].mxu0
        %v586 = vpop.f32.mrb[0].mxu0
        %v587 = vadd.f32 0.0, %v586
        %v588 = vpop.f32.mrb[0].mxu0
        %589 = vmatprep.mubr.bf16.mxu0 0
        %590 = vmatmul.mubr.bf16.gmra.mrb[0].mxu0 %v491
        %v591 = vpop.f32.mrb[0].mxu0
        %v592 = vadd.f32 0.0, %v591
        %v593 = vpop.f32.mrb[0].mxu0
        %v594 = vpop.f32.mrb[0].mxu0
        %v595 = vadd.f32 0.0, %v594
        %v596 = vpop.f32.mrb[0].mxu0
        %597 = vmatprep.mubr.bf16.mxu0 0
        %598 = vmatmul.mubr.bf16.gmra.mrb[0].mxu0 %v494
        %v599 = vpop.f32.mrb[0].mxu0
        %v600 = vadd.f32 0.0, %v599
        %v601 = vpop.f32.mrb[0].mxu0
        %v602 = vpop.f32.mrb[0].mxu0
        %v603 = vadd.f32 0.0, %v602
        %v604 = vpop.f32.mrb[0].mxu0
        %605 = vmatprep.mubr.bf16.mxu0 0
        %606 = vmatmul.mubr.bf16.gmra.mrb[0].mxu0 %v497
        %v607 = vpop.f32.mrb[0].mxu0
        %v608 = vadd.f32 0.0, %v607
        %v609 = vpop.f32.mrb[0].mxu0
        %v610 = vpop.f32.mrb[0].mxu0
        %v611 = vadd.f32 0.0, %v610
        %v612 = vpop.f32.mrb[0].mxu0
        %613 = vmatprep.mubr.bf16.mxu0 0
        %614 = vmatmul.mubr.bf16.gmra.mrb[0].mxu0 %v500
        %v615 = vpop.f32.mrb[0].mxu0
        %v616 = vadd.f32 0.0, %v615
        %v617 = vpop.f32.mrb[0].mxu0
        %v618 = vpop.f32.mrb[0].mxu0
        %v619 = vadd.f32 0.0, %v618
        %v620 = vpop.f32.mrb[0].mxu0
        %621 = vmatprep.mubr.bf16.mxu0 0
        %622 = vmatmul.mubr.bf16.gmra.mrb[0].mxu0 %v503
        %v623 = vpop.f32.mrb[0].mxu0
        %v624 = vadd.f32 0.0, %v623
        %v625 = vpop.f32.mrb[0].mxu0
        %v626 = vpop.f32.mrb[0].mxu0
        %v627 = vadd.f32 0.0, %v626
        %v628 = vpop.f32.mrb[0].mxu0
        %629 = vmatprep.mubr.bf16.mxu0 0
        %630 = vmatmul.mubr.bf16.gmra.mrb[0].mxu0 %v506
        %v631 = vpop.f32.mrb[0].mxu0
        %v632 = vadd.f32 0.0, %v631
        %v633 = vpop.f32.mrb[0].mxu0
        %v634 = vpop.f32.mrb[0].mxu0
        %v635 = vadd.f32 0.0, %v634
        %v636 = vpop.f32.mrb[0].mxu0
        %637 = vmatprep.mubr.bf16.mxu0 0
        %638 = vmatmul.mubr.bf16.gmra.mrb[0].mxu0 %v509
        %v639 = vpop.f32.mrb[0].mxu0
        %v640 = vadd.f32 0.0, %v639
        %v641 = vpop.f32.mrb[0].mxu0
        %v642 = vpop.f32.mrb[0].mxu0
        %v643 = vadd.f32 0.0, %v642
        %v644 = vpop.f32.mrb[0].mxu0
        %645 = vmatprep.mubr.bf16.mxu0 0
        %646 = vmatmul.mubr.bf16.gmra.mrb[0].mxu0 %v512
        %v647 = vpop.f32.mrb[0].mxu0
        %v648 = vadd.f32 0.0, %v647
        %v649 = vpop.f32.mrb[0].mxu0
        %v650 = vpop.f32.mrb[0].mxu0
        %v651 = vadd.f32 0.0, %v650
        %v652 = vpop.f32.mrb[0].mxu0
        %653 = vmatprep.mubr.bf16.mxu0 0
        %654 = vmatmul.mubr.bf16.gmra.mrb[0].mxu0 %v515
        %v655 = vpop.f32.mrb[0].mxu0
        %v656 = vadd.f32 0.0, %v655
        %v657 = vpop.f32.mrb[0].mxu0
        %v658 = vpop.f32.mrb[0].mxu0
        %v659 = vadd.f32 0.0, %v658
        %v660 = vpop.f32.mrb[0].mxu0
        %661 = vmatprep.mubr.bf16.mxu0 0
        %662 = vmatmul.mubr.bf16.gmra.mrb[0].mxu0 %v518
        %v663 = vpop.f32.mrb[0].mxu0
        %v664 = vadd.f32 0.0, %v663
        %v665 = vpop.f32.mrb[0].mxu0
        %v666 = vpop.f32.mrb[0].mxu0
        %v667 = vadd.f32 0.0, %v666
        %v668 = vpop.f32.mrb[0].mxu0
        %669 = vmatprep.mubr.bf16.mxu0 0
        %670 = vmatmul.mubr.bf16.gmra.mrb[0].mxu0 %v521
        %v671 = vpop.f32.mrb[0].mxu0
        %v672 = vadd.f32 0.0, %v671
        %v673 = vpop.f32.mrb[0].mxu0
        %v674 = vpop.f32.mrb[0].mxu0
        %v675 = vadd.f32 0.0, %v674
        %v676 = vpop.f32.mrb[0].mxu0
        %677 = vmatprep.mubr.bf16.mxu0 0
        %678 = vmatmul.mubr.bf16.gmra.mrb[0].mxu0 %v524
        %v679 = vpop.f32.mrb[0].mxu0
        %v680 = vadd.f32 0.0, %v679
        %v681 = vpop.f32.mrb[0].mxu0
        %v682 = vpop.f32.mrb[0].mxu0
        %v683 = vadd.f32 0.0, %v682
        %v684 = vpop.f32.mrb[0].mxu0
        %685 = vmatprep.mubr.bf16.mxu0 0
        %686 = vmatmul.mubr.bf16.gmra.mrb[0].mxu0 %v527
        %v687 = vpop.f32.mrb[0].mxu0
        %v688 = vadd.f32 0.0, %v687
        %v689 = vpop.f32.mrb[0].mxu0
        %v690 = vpop.f32.mrb[0].mxu0
        %v691 = vadd.f32 0.0, %v690
        %v692 = vpop.f32.mrb[0].mxu0
        %693 = vdwg.mxu0
        %v694 = vadd.f32 %v568, %v571
        %v695 = vadd.f32 %v694, %v576
        %v696 = vadd.f32 %v695, %v579
        %v697 = vadd.f32 %v696, %v584
        %v698 = vadd.f32 %v697, %v587
        %v699 = vadd.f32 %v698, %v592
        %v700 = vadd.f32 %v699, %v595
        %v701 = vadd.f32 %v700, %v600
        %v702 = vadd.f32 %v701, %v603
        %v703 = vadd.f32 %v702, %v608
        %v704 = vadd.f32 %v703, %v611
        %v705 = vadd.f32 %v704, %v616
        %v706 = vadd.f32 %v705, %v619
        %v707 = vadd.f32 %v706, %v624
        %v708 = vadd.f32 %v707, %v627
        %v709 = vadd.f32 %v708, %v632
        %v710 = vadd.f32 %v709, %v635
        %v711 = vadd.f32 %v710, %v640
        %v712 = vadd.f32 %v711, %v643
        %v713 = vadd.f32 %v712, %v648
        %v714 = vadd.f32 %v713, %v651
        %v715 = vadd.f32 %v714, %v656
        %v716 = vadd.f32 %v715, %v659
        %v717 = vadd.f32 %v716, %v664
        %v718 = vadd.f32 %v717, %v667
        %v719 = vadd.f32 %v718, %v672
        %v720 = vadd.f32 %v719, %v675
        %v721 = vadd.f32 %v720, %v680
        %v722 = vadd.f32 %v721, %v683
        %v723 = vadd.f32 %v722, %v688
        %v724 = vadd.f32 %v723, %v691
        %v725 = vmul.f32 %v568, %v568
        %v726 = vmul.f32 %v571, %v571
        %v727 = vmul.f32 %v576, %v576
        %v728 = vmul.f32 %v579, %v579
        %v729 = vmul.f32 %v584, %v584
        %v730 = vmul.f32 %v587, %v587
        %v731 = vmul.f32 %v592, %v592
        %v732 = vmul.f32 %v595, %v595
        %v733 = vmul.f32 %v600, %v600
        %v734 = vmul.f32 %v603, %v603
        %v735 = vmul.f32 %v608, %v608
        %v736 = vmul.f32 %v611, %v611
        %v737 = vmul.f32 %v616, %v616
        %v738 = vmul.f32 %v619, %v619
        %v739 = vmul.f32 %v624, %v624
        %v740 = vmul.f32 %v627, %v627
        %v741 = vmul.f32 %v632, %v632
        %v742 = vmul.f32 %v635, %v635
        %v743 = vmul.f32 %v640, %v640
        %v744 = vmul.f32 %v643, %v643
        %v745 = vmul.f32 %v648, %v648
        %v746 = vmul.f32 %v651, %v651
        %v747 = vmul.f32 %v656, %v656
        %v748 = vmul.f32 %v659, %v659
        %v749 = vmul.f32 %v664, %v664
        %v750 = vmul.f32 %v667, %v667
        %v751 = vmul.f32 %v672, %v672
        %v752 = vmul.f32 %v675, %v675
        %v753 = vmul.f32 %v680, %v680
        %v754 = vmul.f32 %v683, %v683
        %v755 = vmul.f32 %v688, %v688
        %v756 = vmul.f32 %v691, %v691
        %v757 = vadd.f32 %v725, %v726
        %v758 = vadd.f32 %v757, %v727
        %v759 = vadd.f32 %v758, %v728
        %v760 = vadd.f32 %v759, %v729
        %v761 = vadd.f32 %v760, %v730
        %v762 = vadd.f32 %v761, %v731
        %v763 = vadd.f32 %v762, %v732
        %v764 = vadd.f32 %v763, %v733
        %v765 = vadd.f32 %v764, %v734
        %v766 = vadd.f32 %v765, %v735
        %v767 = vadd.f32 %v766, %v736
        %v768 = vadd.f32 %v767, %v737
        %v769 = vadd.f32 %v768, %v738
        %v770 = vadd.f32 %v769, %v739
        %v771 = vadd.f32 %v770, %v740
        %v772 = vadd.f32 %v771, %v741
        %v773 = vadd.f32 %v772, %v742
        %v774 = vadd.f32 %v773, %v743
        %v775 = vadd.f32 %v774, %v744
        %v776 = vadd.f32 %v775, %v745
        %v777 = vadd.f32 %v776, %v746
        %v778 = vadd.f32 %v777, %v747
        %v779 = vadd.f32 %v778, %v748
        %v780 = vadd.f32 %v779, %v749
        %v781 = vadd.f32 %v780, %v750
        %v782 = vadd.f32 %v781, %v751
        %v783 = vadd.f32 %v782, %v752
        %v784 = vadd.f32 %v783, %v753
        %v785 = vadd.f32 %v784, %v754
        %v786 = vadd.f32 %v785, %v755
        %v787 = vadd.f32 %v786, %v756
        %788 = vst [vmem:[%s342] sm:$0xff] %v724
        %789 = vst [vmem:[%s346] sm:$0xff] %v787
        %p790 = scmp.lt.s32.totalorder %s15, 1
        %s791 = scalar_select %p790, %s15, 1
        %s792 = smul.addr %s791, 8
        %s793 = scalar_lea.vmem %s2, %s792
        %p794 = scmp.lt.s32.totalorder %s15, 1
        %s795 = scalar_select %p794, %s15, 1
        %s796 = smul.addr %s795, 8
        %s797 = scalar_lea.vmem %s3, %s796
        // Predicated region
        $region70: #{cnn_block_forward.2} parent=64 // pred_check
          %p798 = pneg %p80
        $region71: #{cnn_block_forward.2} parent=64 // pred_check_branch
          %800 = sbr.rel (%p798) target = $region73
        $region72: #{cnn_block_forward.2} parent=64 // pred_region
          _
        $region73: #{cnn_block_forward.2} parent=64 // pred_fallthru
          _
        // Predicated region
        $region74: #{cnn_block_forward.2} parent=64 // pred_check
          %p801 = pneg %p106
        $region75: #{cnn_block_forward.2} parent=64 // pred_check_branch
          %803 = sbr.rel (%p801) target = $region77
        $region76: #{cnn_block_forward.2} parent=64 // pred_region
          _
        $region77: #{cnn_block_forward.2} parent=64 // pred_fallthru
          _
      $region65: #{cnn_block_forward.2} parent=5 // pred_fallthru
        _
      %p804 = scmp.le.s32.totalorder 2, %s10
      // Predicated region
      $region78: #{cnn_block_forward.2} parent=5 // pred_check
        %p805 = pneg %p804
      $region79: #{cnn_block_forward.2} parent=5 // pred_check_branch
        %807 = sbr.rel (%p805) target = $region81
      $region80: #{cnn_block_forward.2} parent=5 // pred_region
        %s808 = ssub.s32 %s10, 2
        // Predicated region
        $region82: #{cnn_block_forward.2} parent=80 // pred_check
          %p809 = pneg %p86
        $region83: #{cnn_block_forward.2} parent=80 // pred_check_branch
          %811 = sbr.rel (%p809) target = $region85
        $region84: #{cnn_block_forward.2} parent=80 // pred_region
          %p812 = scmp.lt.s32.totalorder %s16, 1
          %s813 = scalar_select %p812, %s16, 1
          %s814 = smul.addr %s813, 8
          %s815 = scalar_lea.vmem %s2, %s814
        $region85: #{cnn_block_forward.2} parent=80 // pred_fallthru
          _
        // Predicated region
        $region86: #{cnn_block_forward.2} parent=80 // pred_check
          %p816 = pneg %p112
        $region87: #{cnn_block_forward.2} parent=80 // pred_check_branch
          %818 = sbr.rel (%p816) target = $region89
        $region88: #{cnn_block_forward.2} parent=80 // pred_region
          %p819 = scmp.lt.s32.totalorder %s16, 1
          %s820 = scalar_select %p819, %s16, 1
          %s821 = smul.addr %s820, 8
          %s822 = scalar_lea.vmem %s3, %s821
        $region89: #{cnn_block_forward.2} parent=80 // pred_fallthru
          _
      $region81: #{cnn_block_forward.2} parent=5 // pred_fallthru
        _
    $region6: #{cnn_block_forward.2} parent=1 // loop_footer
      %s14 = sadd.s32 1, %s10
    $region7: #{cnn_block_forward.2} parent=1 // loop_footer_branch
      %9 = sbr.rel target = $region3
    $region8: #{cnn_block_forward.2} parent=1 // loop_exit
      _

// kernel: cnn_block_forward.3
$region0: #{cnn_block_forward.3}
  #allocation0 [shape = 'u32[]', space=smem, size = 0x4, offset = 0x4, fixed_abs, tag = 'smem constant byte address 0x4 - core index']
  #allocation1 [shape = 'u32[144,128]{1,0:T(1,128)}', space=vmem, size = 0x12000, scoped, tag = 'internal scratch']
  %s0 = inlined_call_operand.vmem [shape: f32[1,1,128], index: 0, kind: input, shape index: {}]
  %s1 = inlined_call_operand.vmem [shape: f32[1,1,128], index: 1, kind: input, shape index: {}]
  %s2 = inlined_call_operand.vmem [shape: bf16[4,128,36], index: 2, kind: input, shape index: {}]
  %s3 = inlined_call_operand.vmem [shape: bf16[36,128], index: 3, kind: input, shape index: {}]
  %s4 = inlined_call_operand.vmem [shape: f32[128,128], index: 4, kind: output, shape index: {}]
  %s5 = sld [smem:[#allocation0]]
  $region90: #{cnn_block_forward.3} parent=0
    _
  %s7 = ssub.s32 1, %s5
  %s8 = scalar_select 0, %s7, %s5
  $region1: #{cnn_block_forward.3} parent=0
    #allocation2 [shape = 'u8[131072]{0}', space=vmem, size = 0x20000, scoped, tag = 'input window, operand 2']
    loop: start=0, step=1, limit=4
    $region2: #{cnn_block_forward.3} parent=1 // loop_pre_header
      _
    $region3: #{cnn_block_forward.3} parent=1 // loop_header
      %s10 = sphi 0, %s14
      %p11 = scmp.ge.s32.totalorder %s10, 4
      %s18 = sphi 0, %s18
      %s20 = sphi 0, %s18
      %s21 = sphi 0, %s20
      %s35 = sphi 0, %s21
      %s39 = sphi 0, %s39
      %s41 = sphi 0, %s39
      %s42 = sphi 0, %s41
      %s56 = sphi 0, %s42
      %s62 = sphi 0, %s64
      %s65 = sphi 0, %s62
      %s66 = sphi 0, %s65
      %s82 = sphi 0, %s66
      %s86 = sphi 0, %s86
      %s88 = sphi 0, %s86
      %s89 = sphi 0, %s88
      %s103 = sphi 0, %s89
      %s109 = sphi 0, %s111
      %s112 = sphi 0, %s109
      %s113 = sphi 0, %s112
      %s129 = sphi 0, %s113
    $region4: #{cnn_block_forward.3} parent=1 // loop_header_branch
      %13 = sbr.rel (%p11) target = $region8
    $region5: #{cnn_block_forward.3} parent=1 // loop_body
      %s15 = ssub.s32 %s10, 1
      %s16 = ssub.s32 %s10, 2
      %s17 = sadd.s32 %s10, 1
      %s19 = sadd.s32 %s18, 1
      %p22 = scmp.eq.s32.totalorder %s10, 1
      %p23 = scmp.ne.s32.totalorder %s18, %s20
      %p24 = scmp.eq.s32.totalorder %s10, 0
      %p25 = por %p23, %p24
      %p26 = scmp.ne.s32.totalorder %s18, %s20
      %p27 = scmp.eq.s32.totalorder %s15, 1
      %p28 = por %p26, %p27
      %p29 = scmp.ne.s32.totalorder %s20, %s21
      %p30 = scmp.eq.s32.totalorder %s15, 0
      %p31 = por %p29, %p30
      %p32 = scmp.ne.s32.totalorder %s20, %s21
      %p33 = scmp.eq.s32.totalorder %s16, 1
      %p34 = por %p32, %p33
      %p36 = scmp.ne.s32.totalorder %s21, %s35
      %p37 = scmp.eq.s32.totalorder %s16, 0
      %p38 = por %p36, %p37
      %s40 = sadd.s32 %s39, 1
      %p43 = scmp.eq.s32.totalorder %s10, 1
      %p44 = scmp.ne.s32.totalorder %s39, %s41
      %p45 = scmp.eq.s32.totalorder %s10, 0
      %p46 = por %p44, %p45
      %p47 = scmp.ne.s32.totalorder %s39, %s41
      %p48 = scmp.eq.s32.totalorder %s15, 1
      %p49 = por %p47, %p48
      %p50 = scmp.ne.s32.totalorder %s41, %s42
      %p51 = scmp.eq.s32.totalorder %s15, 0
      %p52 = por %p50, %p51
      %p53 = scmp.ne.s32.totalorder %s41, %s42
      %p54 = scmp.eq.s32.totalorder %s16, 1
      %p55 = por %p53, %p54
      %p57 = scmp.ne.s32.totalorder %s42, %s56
      %p58 = scmp.eq.s32.totalorder %s16, 0
      %p59 = por %p57, %p58
      %s60 = ssub.s32 %s10, %s17
      %p61 = scmp.eq.s32.totalorder %s60, 0
      %s63 = sadd.s32 %s62, 1
      %s64 = scalar_select %p61, %s62, %s63
      %p67 = pneg %p61
      %p68 = scmp.eq.s32.totalorder %s10, 1
      %p69 = por %p67, %p68
      %p70 = scmp.ne.s32.totalorder %s62, %s65
      %p71 = scmp.eq.s32.totalorder %s10, 0
      %p72 = por %p70, %p71
      %p73 = scmp.ne.s32.totalorder %s62, %s65
      %p74 = scmp.eq.s32.totalorder %s15, 1
      %p75 = por %p73, %p74
      %p76 = scmp.ne.s32.totalorder %s65, %s66
      %p77 = scmp.eq.s32.totalorder %s15, 0
      %p78 = por %p76, %p77
      %p79 = scmp.ne.s32.totalorder %s65, %s66
      %p80 = scmp.eq.s32.totalorder %s16, 1
      %p81 = por %p79, %p80
      %p83 = scmp.ne.s32.totalorder %s66, %s82
      %p84 = scmp.eq.s32.totalorder %s16, 0
      %p85 = por %p83, %p84
      %s87 = sadd.s32 %s86, 1
      %p90 = scmp.eq.s32.totalorder %s10, 1
      %p91 = scmp.ne.s32.totalorder %s86, %s88
      %p92 = scmp.eq.s32.totalorder %s10, 0
      %p93 = por %p91, %p92
      %p94 = scmp.ne.s32.totalorder %s86, %s88
      %p95 = scmp.eq.s32.totalorder %s15, 1
      %p96 = por %p94, %p95
      %p97 = scmp.ne.s32.totalorder %s88, %s89
      %p98 = scmp.eq.s32.totalorder %s15, 0
      %p99 = por %p97, %p98
      %p100 = scmp.ne.s32.totalorder %s88, %s89
      %p101 = scmp.eq.s32.totalorder %s16, 1
      %p102 = por %p100, %p101
      %p104 = scmp.ne.s32.totalorder %s89, %s103
      %p105 = scmp.eq.s32.totalorder %s16, 0
      %p106 = por %p104, %p105
      %s107 = ssub.s32 %s10, %s17
      %p108 = scmp.eq.s32.totalorder %s107, 0
      %s110 = sadd.s32 %s109, 1
      %s111 = scalar_select %p108, %s109, %s110
      %p114 = pneg %p108
      %p115 = scmp.eq.s32.totalorder %s10, 1
      %p116 = por %p114, %p115
      %p117 = scmp.ne.s32.totalorder %s109, %s112
      %p118 = scmp.eq.s32.totalorder %s10, 0
      %p119 = por %p117, %p118
      %p120 = scmp.ne.s32.totalorder %s109, %s112
      %p121 = scmp.eq.s32.totalorder %s15, 1
      %p122 = por %p120, %p121
      %p123 = scmp.ne.s32.totalorder %s112, %s113
      %p124 = scmp.eq.s32.totalorder %s15, 0
      %p125 = por %p123, %p124
      %p126 = scmp.ne.s32.totalorder %s112, %s113
      %p127 = scmp.eq.s32.totalorder %s16, 1
      %p128 = por %p126, %p127
      %p130 = scmp.ne.s32.totalorder %s113, %s129
      %p131 = scmp.eq.s32.totalorder %s16, 0
      %p132 = por %p130, %p131
      %p133 = scmp.le.s32.totalorder 1, %s10
      %p134 = scmp.lt.s32.totalorder %s10, 3
      %p135 = pnand %p133, %p134
      %p136 = pneg %p135
      // Predicated region
      $region9: #{cnn_block_forward.3} parent=5 // pred_check
        _
      $region10: #{cnn_block_forward.3} parent=5 // pred_check_branch
        %138 = sbr.rel (%p135) target = $region12
      $region11: #{cnn_block_forward.3} parent=5 // pred_region
        %s139 = ssub.s32 %s10, 1
        // Predicated region
        $region13: #{cnn_block_forward.3} parent=11 // pred_check
          %p140 = pneg %p31
        $region14: #{cnn_block_forward.3} parent=11 // pred_check_branch
          %142 = sbr.rel (%p140) target = $region16
        $region15: #{cnn_block_forward.3} parent=11 // pred_region
          _
        $region16: #{cnn_block_forward.3} parent=11 // pred_fallthru
          _
        // Predicated region
        $region17: #{cnn_block_forward.3} parent=11 // pred_check
          %p143 = pneg %p52
        $region18: #{cnn_block_forward.3} parent=11 // pred_check_branch
          %145 = sbr.rel (%p143) target = $region20
        $region19: #{cnn_block_forward.3} parent=11 // pred_region
          _
        $region20: #{cnn_block_forward.3} parent=11 // pred_fallthru
          _
        // Predicated region
        $region21: #{cnn_block_forward.3} parent=11 // pred_check
          %p146 = pneg %p99
        $region22: #{cnn_block_forward.3} parent=11 // pred_check_branch
          %148 = sbr.rel (%p146) target = $region24
        $region23: #{cnn_block_forward.3} parent=11 // pred_region
          _
        $region24: #{cnn_block_forward.3} parent=11 // pred_fallthru
          _
      $region12: #{cnn_block_forward.3} parent=5 // pred_fallthru
        _
      %p149 = scmp.lt.s32.totalorder %s10, 2
      // Predicated region
      $region25: #{cnn_block_forward.3} parent=5 // pred_check
        %p150 = pneg %p149
      $region26: #{cnn_block_forward.3} parent=5 // pred_check_branch
        %152 = sbr.rel (%p150) target = $region28
      $region27: #{cnn_block_forward.3} parent=5 // pred_region
        // Predicated region
        $region29: #{cnn_block_forward.3} parent=27 // pred_check
          %p153 = pneg %p72
        $region30: #{cnn_block_forward.3} parent=27 // pred_check_branch
          %155 = sbr.rel (%p153) target = $region32
        $region31: #{cnn_block_forward.3} parent=27 // pred_region
          %s156 = sand.u32 %s62, 1
          %s157 = sand.u32 %s62, 1
          %s158 = smul.addr %s157, 128
          %s159 = scalar_lea.vmem [#allocation2], %s158
          %s160 = smul.u32 8, %s10
          %s161 = smul.addr %s160, 4
          %s162 = scalar_lea.vmem %s2, %s161
          // Predicated region
          $region33: #{cnn_block_forward.3} parent=31 // pred_check
            _
          $region34: #{cnn_block_forward.3} parent=31 // pred_check_branch
            %164 = sbr.rel (0) target = $region36
          $region35: #{cnn_block_forward.3} parent=31 // pred_region
            // Predicated region
            $region37: #{cnn_block_forward.3} parent=35 // pred_check
              _
            $region38: #{cnn_block_forward.3} parent=35 // pred_check_branch
              %166 = sbr.rel target = $region40
            $region39: #{cnn_block_forward.3} parent=35 // pred_region
              // Predicated region
              $region52: #{cnn_block_forward.3} parent=39 // pred_check
                _
              $region53: #{cnn_block_forward.3} parent=39 // pred_check_branch
                %243 = sbr.rel (0) target = $region55
              $region54: #{cnn_block_forward.3} parent=39 // pred_region
                loop: start=0, step=1, limit=1
                $region56: #{cnn_block_forward.3} parent=54 // loop_pre_header
                  _
                $region57: #{cnn_block_forward.3} parent=54 // loop_header
                  %s245 = sphi 0, %s249
                  %p246 = scmp.ge.s32.totalorder %s245, 1
                  %s250 = sphi %s162, %s162
                  %s251 = sphi %s159, %s159
                $region58: #{cnn_block_forward.3} parent=54 // loop_header_branch
                  %248 = sbr.rel (%p246) target = $region62
                $region59: #{cnn_block_forward.3} parent=54 // loop_body
                  _
                $region60: #{cnn_block_forward.3} parent=54 // loop_footer
                  %s249 = sadd.s32 1, %s245
                $region61: #{cnn_block_forward.3} parent=54 // loop_footer_branch
                  %244 = sbr.rel target = $region57
                $region62: #{cnn_block_forward.3} parent=54 // loop_exit
                  _
                loop: start=0, step=1, limit=1
                $region63: #{cnn_block_forward.3} parent=54 // loop_pre_header
                  _
                $region64: #{cnn_block_forward.3} parent=54 // loop_header
                  %s254 = sphi 0, %s258
                  %p255 = scmp.ge.s32.totalorder %s254, 1
                  %s259 = sphi %s162, %s162
                  %s260 = sphi %s159, %s159
                $region65: #{cnn_block_forward.3} parent=54 // loop_header_branch
                  %257 = sbr.rel (%p255) target = $region69
                $region66: #{cnn_block_forward.3} parent=54 // loop_body
                  %v261 = vld [vmem:[%s259] sm:$0xf]
                  %262 = vst [vmem:[%s260] sm:$0xf] %v261
                  %v263 = vld [vmem:[%s259 + $0x4] sm:$0xf]
                  %264 = vst [vmem:[%s260 + $0x4] sm:$0xf] %v263
                  %v265 = vld [vmem:[%s259 + $0x8] sm:$0xf]
                  %266 = vst [vmem:[%s260 + $0x8] sm:$0xf] %v265
                  %v267 = vld [vmem:[%s259 + $0xc] sm:$0xf]
                  %268 = vst [vmem:[%s260 + $0xc] sm:$0xf] %v267
                  %v269 = vld [vmem:[%s259 + $0x10] sm:$0xf]
                  %270 = vst [vmem:[%s260 + $0x10] sm:$0xf] %v269
                  %v271 = vld [vmem:[%s259 + $0x14] sm:$0xf]
                  %272 = vst [vmem:[%s260 + $0x14] sm:$0xf] %v271
                  %v273 = vld [vmem:[%s259 + $0x18] sm:$0xf]
                  %274 = vst [vmem:[%s260 + $0x18] sm:$0xf] %v273
                  %v275 = vld [vmem:[%s259 + $0x1c] sm:$0xf]
                  %276 = vst [vmem:[%s260 + $0x1c] sm:$0xf] %v275
                  %v277 = vld [vmem:[%s259 + $0x40] sm:$0xf]
                  %278 = vst [vmem:[%s260 + $0x20] sm:$0xf] %v277
                  %v279 = vld [vmem:[%s259 + $0x44] sm:$0xf]
                  %280 = vst [vmem:[%s260 + $0x24] sm:$0xf] %v279
                  %v281 = vld [vmem:[%s259 + $0x48] sm:$0xf]
                  %282 = vst [vmem:[%s260 + $0x28] sm:$0xf] %v281
                  %v283 = vld [vmem:[%s259 + $0x4c] sm:$0xf]
                  %284 = vst [vmem:[%s260 + $0x2c] sm:$0xf] %v283
                  %v285 = vld [vmem:[%s259 + $0x50] sm:$0xf]
                  %286 = vst [vmem:[%s260 + $0x30] sm:$0xf] %v285
                  %v287 = vld [vmem:[%s259 + $0x54] sm:$0xf]
                  %288 = vst [vmem:[%s260 + $0x34] sm:$0xf] %v287
                  %v289 = vld [vmem:[%s259 + $0x58] sm:$0xf]
                  %290 = vst [vmem:[%s260 + $0x38] sm:$0xf] %v289
                  %v291 = vld [vmem:[%s259 + $0x5c] sm:$0xf]
                  %292 = vst [vmem:[%s260 + $0x3c] sm:$0xf] %v291
                  %v293 = vld [vmem:[%s259 + $0x80] sm:$0xf]
                  %294 = vst [vmem:[%s260 + $0x40] sm:$0xf] %v293
                  %v295 = vld [vmem:[%s259 + $0x84] sm:$0xf]
                  %296 = vst [vmem:[%s260 + $0x44] sm:$0xf] %v295
                  %v297 = vld [vmem:[%s259 + $0x88] sm:$0xf]
                  %298 = vst [vmem:[%s260 + $0x48] sm:$0xf] %v297
                  %v299 = vld [vmem:[%s259 + $0x8c] sm:$0xf]
                  %300 = vst [vmem:[%s260 + $0x4c] sm:$0xf] %v299
                  %v301 = vld [vmem:[%s259 + $0x90] sm:$0xf]
                  %302 = vst [vmem:[%s260 + $0x50] sm:$0xf] %v301
                  %v303 = vld [vmem:[%s259 + $0x94] sm:$0xf]
                  %304 = vst [vmem:[%s260 + $0x54] sm:$0xf] %v303
                  %v305 = vld [vmem:[%s259 + $0x98] sm:$0xf]
                  %306 = vst [vmem:[%s260 + $0x58] sm:$0xf] %v305
                  %v307 = vld [vmem:[%s259 + $0x9c] sm:$0xf]
                  %308 = vst [vmem:[%s260 + $0x5c] sm:$0xf] %v307
                  %v309 = vld [vmem:[%s259 + $0xc0] sm:$0xf]
                  %310 = vst [vmem:[%s260 + $0x60] sm:$0xf] %v309
                  %v311 = vld [vmem:[%s259 + $0xc4] sm:$0xf]
                  %312 = vst [vmem:[%s260 + $0x64] sm:$0xf] %v311
                  %v313 = vld [vmem:[%s259 + $0xc8] sm:$0xf]
                  %314 = vst [vmem:[%s260 + $0x68] sm:$0xf] %v313
                  %v315 = vld [vmem:[%s259 + $0xcc] sm:$0xf]
                  %316 = vst [vmem:[%s260 + $0x6c] sm:$0xf] %v315
                  %v317 = vld [vmem:[%s259 + $0xd0] sm:$0xf]
                  %318 = vst [vmem:[%s260 + $0x70] sm:$0xf] %v317
                  %v319 = vld [vmem:[%s259 + $0xd4] sm:$0xf]
                  %320 = vst [vmem:[%s260 + $0x74] sm:$0xf] %v319
                  %v321 = vld [vmem:[%s259 + $0xd8] sm:$0xf]
                  %322 = vst [vmem:[%s260 + $0x78] sm:$0xf] %v321
                  %v323 = vld [vmem:[%s259 + $0xdc] sm:$0xf]
                  %324 = vst [vmem:[%s260 + $0x7c] sm:$0xf] %v323
                $region67: #{cnn_block_forward.3} parent=54 // loop_footer
                  %s258 = sadd.s32 1, %s254
                $region68: #{cnn_block_forward.3} parent=54 // loop_footer_branch
                  %253 = sbr.rel target = $region64
                $region69: #{cnn_block_forward.3} parent=54 // loop_exit
                  _
              $region55: #{cnn_block_forward.3} parent=39 // pred_fallthru
                _
            $region40: #{cnn_block_forward.3} parent=35 // pred_fallthru
              _
            // Predicated region
            $region41: #{cnn_block_forward.3} parent=35 // pred_check
              _
            $region42: #{cnn_block_forward.3} parent=35 // pred_check_branch
              %168 = sbr.rel (0) target = $region44
            $region43: #{cnn_block_forward.3} parent=35 // pred_region
              loop: start=0, step=1, limit=1
              $region45: #{cnn_block_forward.3} parent=43 // loop_pre_header
                _
              $region46: #{cnn_block_forward.3} parent=43 // loop_header
                %s171 = sphi 0, %s175
                %p172 = scmp.ge.s32.totalorder %s171, 1
                %s176 = sphi %s162, %s162
                %s177 = sphi %s159, %s159
              $region47: #{cnn_block_forward.3} parent=43 // loop_header_branch
                %174 = sbr.rel (%p172) target = $region51
              $region48: #{cnn_block_forward.3} parent=43 // loop_body
                %v178 = vld [vmem:[%s176] sm:$0xf]
                %179 = vst [vmem:[%s177] sm:$0xf] %v178
                %v180 = vld [vmem:[%s176 + $0x4] sm:$0xf]
                %181 = vst [vmem:[%s177 + $0x4] sm:$0xf] %v180
                %v182 = vld [vmem:[%s176 + $0x8] sm:$0xf]
                %183 = vst [vmem:[%s177 + $0x8] sm:$0xf] %v182
                %v184 = vld [vmem:[%s176 + $0xc] sm:$0xf]
                %185 = vst [vmem:[%s177 + $0xc] sm:$0xf] %v184
                %v186 = vld [vmem:[%s176 + $0x10] sm:$0xf]
                %187 = vst [vmem:[%s177 + $0x10] sm:$0xf] %v186
                %v188 = vld [vmem:[%s176 + $0x14] sm:$0xf]
                %189 = vst [vmem:[%s177 + $0x14] sm:$0xf] %v188
                %v190 = vld [vmem:[%s176 + $0x18] sm:$0xf]
                %191 = vst [vmem:[%s177 + $0x18] sm:$0xf] %v190
                %v192 = vld [vmem:[%s176 + $0x1c] sm:$0xf]
                %193 = vst [vmem:[%s177 + $0x1c] sm:$0xf] %v192
                %v194 = vld [vmem:[%s176 + $0x40] sm:$0xf]
                %195 = vst [vmem:[%s177 + $0x20] sm:$0xf] %v194
                %v196 = vld [vmem:[%s176 + $0x44] sm:$0xf]
                %197 = vst [vmem:[%s177 + $0x24] sm:$0xf] %v196
                %v198 = vld [vmem:[%s176 + $0x48] sm:$0xf]
                %199 = vst [vmem:[%s177 + $0x28] sm:$0xf] %v198
                %v200 = vld [vmem:[%s176 + $0x4c] sm:$0xf]
                %201 = vst [vmem:[%s177 + $0x2c] sm:$0xf] %v200
                %v202 = vld [vmem:[%s176 + $0x50] sm:$0xf]
                %203 = vst [vmem:[%s177 + $0x30] sm:$0xf] %v202
                %v204 = vld [vmem:[%s176 + $0x54] sm:$0xf]
                %205 = vst [vmem:[%s177 + $0x34] sm:$0xf] %v204
                %v206 = vld [vmem:[%s176 + $0x58] sm:$0xf]
                %207 = vst [vmem:[%s177 + $0x38] sm:$0xf] %v206
                %v208 = vld [vmem:[%s176 + $0x5c] sm:$0xf]
                %209 = vst [vmem:[%s177 + $0x3c] sm:$0xf] %v208
                %v210 = vld [vmem:[%s176 + $0x80] sm:$0xf]
                %211 = vst [vmem:[%s177 + $0x40] sm:$0xf] %v210
                %v212 = vld [vmem:[%s176 + $0x84] sm:$0xf]
                %213 = vst [vmem:[%s177 + $0x44] sm:$0xf] %v212
                %v214 = vld [vmem:[%s176 + $0x88] sm:$0xf]
                %215 = vst [vmem:[%s177 + $0x48] sm:$0xf] %v214
                %v216 = vld [vmem:[%s176 + $0x8c] sm:$0xf]
                %217 = vst [vmem:[%s177 + $0x4c] sm:$0xf] %v216
                %v218 = vld [vmem:[%s176 + $0x90] sm:$0xf]
                %219 = vst [vmem:[%s177 + $0x50] sm:$0xf] %v218
                %v220 = vld [vmem:[%s176 + $0x94] sm:$0xf]
                %221 = vst [vmem:[%s177 + $0x54] sm:$0xf] %v220
                %v222 = vld [vmem:[%s176 + $0x98] sm:$0xf]
                %223 = vst [vmem:[%s177 + $0x58] sm:$0xf] %v222
                %v224 = vld [vmem:[%s176 + $0x9c] sm:$0xf]
                %225 = vst [vmem:[%s177 + $0x5c] sm:$0xf] %v224
                %v226 = vld [vmem:[%s176 + $0xc0] sm:$0xf]
                %227 = vst [vmem:[%s177 + $0x60] sm:$0xf] %v226
                %v228 = vld [vmem:[%s176 + $0xc4] sm:$0xf]
                %229 = vst [vmem:[%s177 + $0x64] sm:$0xf] %v228
                %v230 = vld [vmem:[%s176 + $0xc8] sm:$0xf]
                %231 = vst [vmem:[%s177 + $0x68] sm:$0xf] %v230
                %v232 = vld [vmem:[%s176 + $0xcc] sm:$0xf]
                %233 = vst [vmem:[%s177 + $0x6c] sm:$0xf] %v232
                %v234 = vld [vmem:[%s176 + $0xd0] sm:$0xf]
                %235 = vst [vmem:[%s177 + $0x70] sm:$0xf] %v234
                %v236 = vld [vmem:[%s176 + $0xd4] sm:$0xf]
                %237 = vst [vmem:[%s177 + $0x74] sm:$0xf] %v236
                %v238 = vld [vmem:[%s176 + $0xd8] sm:$0xf]
                %239 = vst [vmem:[%s177 + $0x78] sm:$0xf] %v238
                %v240 = vld [vmem:[%s176 + $0xdc] sm:$0xf]
                %241 = vst [vmem:[%s177 + $0x7c] sm:$0xf] %v240
              $region49: #{cnn_block_forward.3} parent=43 // loop_footer
                %s175 = sadd.s32 1, %s171
              $region50: #{cnn_block_forward.3} parent=43 // loop_footer_branch
                %170 = sbr.rel target = $region46
              $region51: #{cnn_block_forward.3} parent=43 // loop_exit
                _
            $region44: #{cnn_block_forward.3} parent=35 // pred_fallthru
              _
          $region36: #{cnn_block_forward.3} parent=31 // pred_fallthru
            _
          %325 = vnop
        $region32: #{cnn_block_forward.3} parent=27 // pred_fallthru
          _
      $region28: #{cnn_block_forward.3} parent=5 // pred_fallthru
        _
      %p326 = scmp.le.s32.totalorder 1, %s10
      %p327 = scmp.lt.s32.totalorder %s10, 3
      %p328 = pnand %p326, %p327
      %p329 = pneg %p328
      // Predicated region
      $region70: #{cnn_block_forward.3} parent=5 // pred_check
        _
      $region71: #{cnn_block_forward.3} parent=5 // pred_check_branch
        %331 = sbr.rel (%p328) target = $region73
      $region72: #{cnn_block_forward.3} parent=5 // pred_region
        %s332 = ssub.s32 %s10, 1
        %s333 = sand.u32 %s65, 1
        %s334 = sand.u32 %s65, 1
        %s335 = smul.addr %s334, 128
        %s336 = scalar_lea.vmem [#allocation2], %s335
        // Predicated region
        $region74: #{cnn_block_forward.3} parent=72 // pred_check
          %p337 = pneg %p78
        $region75: #{cnn_block_forward.3} parent=72 // pred_check_branch
          %339 = sbr.rel (%p337) target = $region77
        $region76: #{cnn_block_forward.3} parent=72 // pred_region
          _
        $region77: #{cnn_block_forward.3} parent=72 // pred_fallthru
          _
        %p340 = pneg %p31
        %p341 = pneg %p28
        %p342 = pneg %p52
        %p343 = pneg %p49
        %s344 = sand.u32 %s65, 1
        %s345 = sand.u32 %s65, 1
        %s346 = smul.addr %s345, 128
        %s347 = scalar_lea.vmem [#allocation2], %s346
        %p348 = pneg %p78
        %p349 = pneg %p75
        %p350 = pneg %p99
        %p351 = pneg %p96
        %p352 = pneg %p125
        %p353 = pneg %p122
        %s354 = smul.u32 8, %s15
        %p355 = scmp.lt.s32.totalorder %s354, 15
        %s356 = scalar_select %p355, %s354, 15
        %s357 = smul.addr %s356, 8
        %s358 = scalar_lea.vmem %s4, %s357
        %s359 = smul.u32 8, %s15
        %s360 = smul.u32 8, %s15
        %p361 = scmp.lt.s32.totalorder %s360, 15
        %s362 = scalar_select %p361, %s360, 15
        %s363 = smul.addr %s362, 8
        %s364 = scalar_lea.vmem %s4, %s363
        %s365 = smul.u32 8, %s15
        %v367 = vld [vmem:[%s336] sm:$0xf]
        %v368 = vld [vmem:[%s336 + $0x4] sm:$0xf]
        %v369 = vld [vmem:[%s336 + $0x8] sm:$0xf]
        %v370 = vld [vmem:[%s336 + $0xc] sm:$0xf]
        %v371 = vld [vmem:[%s336 + $0x10] sm:$0xf]
        %v372 = vld [vmem:[%s336 + $0x14] sm:$0xf]
        %v373 = vld [vmem:[%s336 + $0x18] sm:$0xf]
        %v374 = vld [vmem:[%s336 + $0x1c] sm:$0xf]
        %v375 = vld [vmem:[%s336 + $0x20] sm:$0xf]
        %v376 = vld [vmem:[%s336 + $0x24] sm:$0xf]
        %v377 = vld [vmem:[%s336 + $0x28] sm:$0xf]
        %v378 = vld [vmem:[%s336 + $0x2c] sm:$0xf]
        %v379 = vld [vmem:[%s336 + $0x30] sm:$0xf]
        %v380 = vld [vmem:[%s336 + $0x34] sm:$0xf]
        %v381 = vld [vmem:[%s336 + $0x38] sm:$0xf]
        %v382 = vld [vmem:[%s336 + $0x3c] sm:$0xf]
        %v383 = vld [vmem:[%s336 + $0x40] sm:$0xf]
        %v384 = vld [vmem:[%s336 + $0x44] sm:$0xf]
        %v385 = vld [vmem:[%s336 + $0x48] sm:$0xf]
        %v386 = vld [vmem:[%s336 + $0x4c] sm:$0xf]
        %v387 = vld [vmem:[%s336 + $0x50] sm:$0xf]
        %v388 = vld [vmem:[%s336 + $0x54] sm:$0xf]
        %v389 = vld [vmem:[%s336 + $0x58] sm:$0xf]
        %v390 = vld [vmem:[%s336 + $0x5c] sm:$0xf]
        %v391 = vld [vmem:[%s336 + $0x60] sm:$0xf]
        %v392 = vld [vmem:[%s336 + $0x64] sm:$0xf]
        %v393 = vld [vmem:[%s336 + $0x68] sm:$0xf]
        %v394 = vld [vmem:[%s336 + $0x6c] sm:$0xf]
        %v395 = vld [vmem:[%s336 + $0x70] sm:$0xf]
        %v396 = vld [vmem:[%s336 + $0x74] sm:$0xf]
        %v397 = vld [vmem:[%s336 + $0x78] sm:$0xf]
        %v398 = vld [vmem:[%s336 + $0x7c] sm:$0xf]
        %v399 = vld [vmem:[%s3] sm:$0xf]
        %v400 = vld [vmem:[%s3 + $0x4] sm:$0xf]
        %v401 = vld [vmem:[%s3 + $0x8] sm:$0xf]
        %v402 = vld [vmem:[%s3 + $0xc] sm:$0xf]
        %v403 = vld [vmem:[%s3 + $0x10] sm:$0x3]
        %v436 = vunpack.c.l.b16 %v367
        %v437 = vunpack.c.l.b16 %v368
        %v438 = vunpack.c.l.b16 %v369
        %v439 = vunpack.c.l.b16 %v370
        %v440 = vunpack.c.l.b16 %v371
        %v441 = vunpack.c.l.b16 %v372
        %v442 = vunpack.c.l.b16 %v373
        %v443 = vunpack.c.l.b16 %v374
        %v444 = vunpack.c.l.b16 %v375
        %v445 = vunpack.c.l.b16 %v376
        %v446 = vunpack.c.l.b16 %v377
        %v447 = vunpack.c.l.b16 %v378
        %v448 = vunpack.c.l.b16 %v379
        %v449 = vunpack.c.l.b16 %v380
        %v450 = vunpack.c.l.b16 %v381
        %v451 = vunpack.c.l.b16 %v382
        %v452 = vunpack.c.l.b16 %v383
        %v453 = vunpack.c.l.b16 %v384
        %v454 = vunpack.c.l.b16 %v385
        %v455 = vunpack.c.l.b16 %v386
        %v456 = vunpack.c.l.b16 %v387
        %v457 = vunpack.c.l.b16 %v388
        %v458 = vunpack.c.l.b16 %v389
        %v459 = vunpack.c.l.b16 %v390
        %v460 = vunpack.c.l.b16 %v391
        %v461 = vunpack.c.l.b16 %v392
        %v462 = vunpack.c.l.b16 %v393
        %v463 = vunpack.c.l.b16 %v394
        %v464 = vunpack.c.l.b16 %v395
        %v465 = vunpack.c.l.b16 %v396
        %v466 = vunpack.c.l.b16 %v397
        %v467 = vunpack.c.l.b16 %v398
        %v468 = vpack.c.b16 %v437, %v436
        %v469 = vpack.c.b16 %v439, %v438
        %v470 = vpack.c.b16 %v441, %v440
        %v471 = vpack.c.b16 %v443, %v442
        %v472 = vpack.c.b16 %v445, %v444
        %v473 = vpack.c.b16 %v447, %v446
        %v474 = vpack.c.b16 %v449, %v448
        %v475 = vpack.c.b16 %v451, %v450
        %v476 = vpack.c.b16 %v453, %v452
        %v477 = vpack.c.b16 %v455, %v454
        %v478 = vpack.c.b16 %v457, %v456
        %v479 = vpack.c.b16 %v459, %v458
        %v480 = vpack.c.b16 %v461, %v460
        %v481 = vpack.c.b16 %v463, %v462
        %v482 = vpack.c.b16 %v465, %v464
        %v483 = vpack.c.b16 %v467, %v466
        %v489 = vunpack.c.l.b16 %v399
        %v490 = vunpack.c.l.b16 %v400
        %v491 = vunpack.c.l.b16 %v401
        %v492 = vunpack.c.l.b16 %v402
        %v493 = vunpack.c.l.b16 %v403
        %v494 = vpack.c.b16 %v490, %v489
        %v495 = vpack.c.b16 %v492, %v491
        %v496 = vpack.c.b16 %v493, %v493
        %vm499 = vcmask 293888
        %v501 = vsel %vm499, %v468, 0
        %v504 = vsel %vm499, %v469, 0
        %v507 = vsel %vm499, %v470, 0
        %v510 = vsel %vm499, %v471, 0
        %v513 = vsel %vm499, %v472, 0
        %v516 = vsel %vm499, %v473, 0
        %v519 = vsel %vm499, %v474, 0
        %v522 = vsel %vm499, %v475, 0
        %v525 = vsel %vm499, %v476, 0
        %v528 = vsel %vm499, %v477, 0
        %v531 = vsel %vm499, %v478, 0
        %v534 = vsel %vm499, %v479, 0
        %v537 = vsel %vm499, %v480, 0
        %v540 = vsel %vm499, %v481, 0
        %v543 = vsel %vm499, %v482, 0
        %v546 = vsel %vm499, %v483, 0
        %vm548 = vcmask 1041408
        %v550 = vsel %vm548, %v496, 0
        %552 = vmatprep.subr.bf16.mxu0 0
        %553 = vmatpush1.bf16.msra.mxu0 %v494
        %554 = vmatprep.subr.bf16.mxu0 0
        %555 = vmatpush1.bf16.msra.mxu0 %v495
        %556 = vmatprep.subr.bf16.mxu0 0
        %557 = vmatpush1.bf16.msra.mxu0 %v550
        %558 = vmatprep.subr.bf16.mxu0 0
        %559 = vmatpush1.bf16.msra.mxu0 0
        %560 = vmatprep.subr.bf16.mxu0 0
        %561 = vmatpush1.bf16.msra.mxu0 0
        %562 = vmatprep.subr.bf16.mxu0 0
        %563 = vmatpush1.bf16.msra.mxu0 0
        %564 = vmatprep.subr.bf16.mxu0 0
        %565 = vmatpush1.bf16.msra.mxu0 0
        %566 = vmatprep.subr.bf16.mxu0 0
        %567 = vmatpush1.bf16.msra.mxu0 0
        %568 = vmatprep.subr.bf16.mxu0 0
        %569 = vmatpush1.bf16.msra.mxu0 0
        %570 = vmatprep.subr.bf16.mxu0 0
        %571 = vmatpush1.bf16.msra.mxu0 0
        %572 = vmatprep.subr.bf16.mxu0 0
        %573 = vmatpush1.bf16.msra.mxu0 0
        %574 = vmatprep.subr.bf16.mxu0 0
        %575 = vmatpush1.bf16.msra.mxu0 0
        %576 = vmatprep.subr.bf16.mxu0 0
        %577 = vmatpush1.bf16.msra.mxu0 0
        %578 = vmatprep.subr.bf16.mxu0 0
        %579 = vmatpush1.bf16.msra.mxu0 0
        %580 = vmatprep.subr.bf16.mxu0 0
        %581 = vmatpush1.bf16.msra.mxu0 0
        %582 = vmatprep.subr.bf16.mxu0 0
        %583 = vmatpush1.bf16.msra.mxu0 0
        %584 = vmatprep.mubr.bf16.mxu0 0
        %585 = vmatmul.mubr.bf16.gmra.mrb[0].mxu0 %v501
        %v586 = vpop.f32.mrb[0].mxu0
        %v587 = vadd.f32 0.0, %v586
        %v588 = vpop.f32.mrb[0].mxu0
        %v589 = vpop.f32.mrb[0].mxu0
        %v590 = vadd.f32 0.0, %v589
        %v591 = vpop.f32.mrb[0].mxu0
        %592 = vmatprep.mubr.bf16.mxu0 0
        %593 = vmatmul.mubr.bf16.gmra.mrb[0].mxu0 %v504
        %v594 = vpop.f32.mrb[0].mxu0
        %v595 = vadd.f32 0.0, %v594
        %v596 = vpop.f32.mrb[0].mxu0
        %v597 = vpop.f32.mrb[0].mxu0
        %v598 = vadd.f32 0.0, %v597
        %v599 = vpop.f32.mrb[0].mxu0
        %600 = vmatprep.mubr.bf16.mxu0 0
        %601 = vmatmul.mubr.bf16.gmra.mrb[0].mxu0 %v507
        %v602 = vpop.f32.mrb[0].mxu0
        %v603 = vadd.f32 0.0, %v602
        %v604 = vpop.f32.mrb[0].mxu0
        %v605 = vpop.f32.mrb[0].mxu0
        %v606 = vadd.f32 0.0, %v605
        %v607 = vpop.f32.mrb[0].mxu0
        %608 = vmatprep.mubr.bf16.mxu0 0
        %609 = vmatmul.mubr.bf16.gmra.mrb[0].mxu0 %v510
        %v610 = vpop.f32.mrb[0].mxu0
        %v611 = vadd.f32 0.0, %v610
        %v612 = vpop.f32.mrb[0].mxu0
        %v613 = vpop.f32.mrb[0].mxu0
        %v614 = vadd.f32 0.0, %v613
        %v615 = vpop.f32.mrb[0].mxu0
        %616 = vmatprep.mubr.bf16.mxu0 0
        %617 = vmatmul.mubr.bf16.gmra.mrb[0].mxu0 %v513
        %v618 = vpop.f32.mrb[0].mxu0
        %v619 = vadd.f32 0.0, %v618
        %v620 = vpop.f32.mrb[0].mxu0
        %v621 = vpop.f32.mrb[0].mxu0
        %v622 = vadd.f32 0.0, %v621
        %v623 = vpop.f32.mrb[0].mxu0
        %624 = vmatprep.mubr.bf16.mxu0 0
        %625 = vmatmul.mubr.bf16.gmra.mrb[0].mxu0 %v516
        %v626 = vpop.f32.mrb[0].mxu0
        %v627 = vadd.f32 0.0, %v626
        %v628 = vpop.f32.mrb[0].mxu0
        %v629 = vpop.f32.mrb[0].mxu0
        %v630 = vadd.f32 0.0, %v629
        %v631 = vpop.f32.mrb[0].mxu0
        %632 = vmatprep.mubr.bf16.mxu0 0
        %633 = vmatmul.mubr.bf16.gmra.mrb[0].mxu0 %v519
        %v634 = vpop.f32.mrb[0].mxu0
        %v635 = vadd.f32 0.0, %v634
        %v636 = vpop.f32.mrb[0].mxu0
        %v637 = vpop.f32.mrb[0].mxu0
        %v638 = vadd.f32 0.0, %v637
        %v639 = vpop.f32.mrb[0].mxu0
        %640 = vmatprep.mubr.bf16.mxu0 0
        %641 = vmatmul.mubr.bf16.gmra.mrb[0].mxu0 %v522
        %v642 = vpop.f32.mrb[0].mxu0
        %v643 = vadd.f32 0.0, %v642
        %v644 = vpop.f32.mrb[0].mxu0
        %v645 = vpop.f32.mrb[0].mxu0
        %v646 = vadd.f32 0.0, %v645
        %v647 = vpop.f32.mrb[0].mxu0
        %648 = vmatprep.mubr.bf16.mxu0 0
        %649 = vmatmul.mubr.bf16.gmra.mrb[0].mxu0 %v525
        %v650 = vpop.f32.mrb[0].mxu0
        %v651 = vadd.f32 0.0, %v650
        %v652 = vpop.f32.mrb[0].mxu0
        %v653 = vpop.f32.mrb[0].mxu0
        %v654 = vadd.f32 0.0, %v653
        %v655 = vpop.f32.mrb[0].mxu0
        %656 = vmatprep.mubr.bf16.mxu0 0
        %657 = vmatmul.mubr.bf16.gmra.mrb[0].mxu0 %v528
        %v658 = vpop.f32.mrb[0].mxu0
        %v659 = vadd.f32 0.0, %v658
        %v660 = vpop.f32.mrb[0].mxu0
        %v661 = vpop.f32.mrb[0].mxu0
        %v662 = vadd.f32 0.0, %v661
        %v663 = vpop.f32.mrb[0].mxu0
        %664 = vmatprep.mubr.bf16.mxu0 0
        %665 = vmatmul.mubr.bf16.gmra.mrb[0].mxu0 %v531
        %v666 = vpop.f32.mrb[0].mxu0
        %v667 = vadd.f32 0.0, %v666
        %v668 = vpop.f32.mrb[0].mxu0
        %v669 = vpop.f32.mrb[0].mxu0
        %v670 = vadd.f32 0.0, %v669
        %v671 = vpop.f32.mrb[0].mxu0
        %672 = vmatprep.mubr.bf16.mxu0 0
        %673 = vmatmul.mubr.bf16.gmra.mrb[0].mxu0 %v534
        %v674 = vpop.f32.mrb[0].mxu0
        %v675 = vadd.f32 0.0, %v674
        %v676 = vpop.f32.mrb[0].mxu0
        %v677 = vpop.f32.mrb[0].mxu0
        %v678 = vadd.f32 0.0, %v677
        %v679 = vpop.f32.mrb[0].mxu0
        %680 = vmatprep.mubr.bf16.mxu0 0
        %681 = vmatmul.mubr.bf16.gmra.mrb[0].mxu0 %v537
        %v682 = vpop.f32.mrb[0].mxu0
        %v683 = vadd.f32 0.0, %v682
        %v684 = vpop.f32.mrb[0].mxu0
        %v685 = vpop.f32.mrb[0].mxu0
        %v686 = vadd.f32 0.0, %v685
        %v687 = vpop.f32.mrb[0].mxu0
        %688 = vmatprep.mubr.bf16.mxu0 0
        %689 = vmatmul.mubr.bf16.gmra.mrb[0].mxu0 %v540
        %v690 = vpop.f32.mrb[0].mxu0
        %v691 = vadd.f32 0.0, %v690
        %v692 = vpop.f32.mrb[0].mxu0
        %v693 = vpop.f32.mrb[0].mxu0
        %v694 = vadd.f32 0.0, %v693
        %v695 = vpop.f32.mrb[0].mxu0
        %696 = vmatprep.mubr.bf16.mxu0 0
        %697 = vmatmul.mubr.bf16.gmra.mrb[0].mxu0 %v543
        %v698 = vpop.f32.mrb[0].mxu0
        %v699 = vadd.f32 0.0, %v698
        %v700 = vpop.f32.mrb[0].mxu0
        %v701 = vpop.f32.mrb[0].mxu0
        %v702 = vadd.f32 0.0, %v701
        %v703 = vpop.f32.mrb[0].mxu0
        %704 = vmatprep.mubr.bf16.mxu0 0
        %705 = vmatmul.mubr.bf16.gmra.mrb[0].mxu0 %v546
        %v706 = vpop.f32.mrb[0].mxu0
        %v707 = vadd.f32 0.0, %v706
        %v708 = vpop.f32.mrb[0].mxu0
        %v709 = vpop.f32.mrb[0].mxu0
        %v710 = vadd.f32 0.0, %v709
        %v711 = vpop.f32.mrb[0].mxu0
        %712 = vdwg.mxu0
        %v713 = vld [vmem:[%s0] sm:$0x1]
        %v715 = vlaneseq
        %v716 = vshrl.u32 %v715, 7
        %v717 = vsub.s32 0, %v716
        %v718 = vrot.slane %v713, %v717
        %v720 = vmul.f32 %v587, %v718
        %v721 = vmul.f32 %v590, %v718
        %v722 = vmul.f32 %v595, %v718
        %v723 = vmul.f32 %v598, %v718
        %v724 = vmul.f32 %v603, %v718
        %v725 = vmul.f32 %v606, %v718
        %v726 = vmul.f32 %v611, %v718
        %v727 = vmul.f32 %v614, %v718
        %v728 = vmul.f32 %v619, %v718
        %v729 = vmul.f32 %v622, %v718
        %v730 = vmul.f32 %v627, %v718
        %v731 = vmul.f32 %v630, %v718
        %v732 = vmul.f32 %v635, %v718
        %v733 = vmul.f32 %v638, %v718
        %v734 = vmul.f32 %v643, %v718
        %v735 = vmul.f32 %v646, %v718
        %v736 = vmul.f32 %v651, %v718
        %v737 = vmul.f32 %v654, %v718
        %v738 = vmul.f32 %v659, %v718
        %v739 = vmul.f32 %v662, %v718
        %v740 = vmul.f32 %v667, %v718
        %v741 = vmul.f32 %v670, %v718
        %v742 = vmul.f32 %v675, %v718
        %v743 = vmul.f32 %v678, %v718
        %v744 = vmul.f32 %v683, %v718
        %v745 = vmul.f32 %v686, %v718
        %v746 = vmul.f32 %v691, %v718
        %v747 = vmul.f32 %v694, %v718
        %v748 = vmul.f32 %v699, %v718
        %v749 = vmul.f32 %v702, %v718
        %v750 = vmul.f32 %v707, %v718
        %v751 = vmul.f32 %v710, %v718
        %v752 = vld [vmem:[%s1] sm:$0x1]
        %v754 = vlaneseq
        %v755 = vshrl.u32 %v754, 7
        %v756 = vsub.s32 0, %v755
        %v757 = vrot.slane %v752, %v756
        %v759 = vadd.f32 %v720, %v757
        %v760 = vadd.f32 %v721, %v757
        %v761 = vadd.f32 %v722, %v757
        %v762 = vadd.f32 %v723, %v757
        %v763 = vadd.f32 %v724, %v757
        %v764 = vadd.f32 %v725, %v757
        %v765 = vadd.f32 %v726, %v757
        %v766 = vadd.f32 %v727, %v757
        %v767 = vadd.f32 %v728, %v757
        %v768 = vadd.f32 %v729, %v757
        %v769 = vadd.f32 %v730, %v757
        %v770 = vadd.f32 %v731, %v757
        %v771 = vadd.f32 %v732, %v757
        %v772 = vadd.f32 %v733, %v757
        %v773 = vadd.f32 %v734, %v757
        %v774 = vadd.f32 %v735, %v757
        %v775 = vadd.f32 %v736, %v757
        %v776 = vadd.f32 %v737, %v757
        %v777 = vadd.f32 %v738, %v757
        %v778 = vadd.f32 %v739, %v757
        %v779 = vadd.f32 %v740, %v757
        %v780 = vadd.f32 %v741, %v757
        %v781 = vadd.f32 %v742, %v757
        %v782 = vadd.f32 %v743, %v757
        %v783 = vadd.f32 %v744, %v757
        %v784 = vadd.f32 %v745, %v757
        %v785 = vadd.f32 %v746, %v757
        %v786 = vadd.f32 %v747, %v757
        %v787 = vadd.f32 %v748, %v757
        %v788 = vadd.f32 %v749, %v757
        %v789 = vadd.f32 %v750, %v757
        %v790 = vadd.f32 %v751, %v757
        %v791 = vmax.f32 %v759, 0.0
        %v792 = vmax.f32 %v760, 0.0
        %v793 = vmax.f32 %v761, 0.0
        %v794 = vmax.f32 %v762, 0.0
        %v795 = vmax.f32 %v763, 0.0
        %v796 = vmax.f32 %v764, 0.0
        %v797 = vmax.f32 %v765, 0.0
        %v798 = vmax.f32 %v766, 0.0
        %v799 = vmax.f32 %v767, 0.0
        %v800 = vmax.f32 %v768, 0.0
        %v801 = vmax.f32 %v769, 0.0
        %v802 = vmax.f32 %v770, 0.0
        %v803 = vmax.f32 %v771, 0.0
        %v804 = vmax.f32 %v772, 0.0
        %v805 = vmax.f32 %v773, 0.0
        %v806 = vmax.f32 %v774, 0.0
        %v807 = vmax.f32 %v775, 0.0
        %v808 = vmax.f32 %v776, 0.0
        %v809 = vmax.f32 %v777, 0.0
        %v810 = vmax.f32 %v778, 0.0
        %v811 = vmax.f32 %v779, 0.0
        %v812 = vmax.f32 %v780, 0.0
        %v813 = vmax.f32 %v781, 0.0
        %v814 = vmax.f32 %v782, 0.0
        %v815 = vmax.f32 %v783, 0.0
        %v816 = vmax.f32 %v784, 0.0
        %v817 = vmax.f32 %v785, 0.0
        %v818 = vmax.f32 %v786, 0.0
        %v819 = vmax.f32 %v787, 0.0
        %v820 = vmax.f32 %v788, 0.0
        %v821 = vmax.f32 %v789, 0.0
        %v822 = vmax.f32 %v790, 0.0
        %v823 = vmax.f32 %v791, %v799
        %v824 = vmax.f32 %v823, %v807
        %v825 = vmax.f32 %v824, %v815
        %v826 = vmax.f32 %v792, %v800
        %v827 = vmax.f32 %v826, %v808
        %v828 = vmax.f32 %v827, %v816
        %v829 = vmax.f32 %v793, %v801
        %v830 = vmax.f32 %v829, %v809
        %v831 = vmax.f32 %v830, %v817
        %v832 = vmax.f32 %v794, %v802
        %v833 = vmax.f32 %v832, %v810
        %v834 = vmax.f32 %v833, %v818
        %v835 = vmax.f32 %v795, %v803
        %v836 = vmax.f32 %v835, %v811
        %v837 = vmax.f32 %v836, %v819
        %v838 = vmax.f32 %v796, %v804
        %v839 = vmax.f32 %v838, %v812
        %v840 = vmax.f32 %v839, %v820
        %v841 = vmax.f32 %v797, %v805
        %v842 = vmax.f32 %v841, %v813
        %v843 = vmax.f32 %v842, %v821
        %v844 = vmax.f32 %v798, %v806
        %v845 = vmax.f32 %v844, %v814
        %v846 = vmax.f32 %v845, %v822
        %847 = vst [vmem:[%s364] sm:$0xff] %v825
        %848 = vst [vmem:[%s364 + $0x8] sm:$0xff] %v828
        %849 = vst [vmem:[%s364 + $0x10] sm:$0xff] %v831
        %850 = vst [vmem:[%s364 + $0x18] sm:$0xff] %v834
        %851 = vst [vmem:[%s364 + $0x20] sm:$0xff] %v837
        %852 = vst [vmem:[%s364 + $0x28] sm:$0xff] %v840
        %853 = vst [vmem:[%s364 + $0x30] sm:$0xff] %v843
        %854 = vst [vmem:[%s364 + $0x38] sm:$0xff] %v846
        %s855 = smul.u32 8, %s15
        %p856 = scmp.lt.s32.totalorder %s855, 15
        %s857 = scalar_select %p856, %s855, 15
        %s858 = smul.addr %s857, 8
        %s859 = scalar_lea.vmem %s4, %s858
        // Predicated region
        $region78: #{cnn_block_forward.3} parent=72 // pred_check
          %p860 = pneg %p122
        $region79: #{cnn_block_forward.3} parent=72 // pred_check_branch
          %862 = sbr.rel (%p860) target = $region81
        $region80: #{cnn_block_forward.3} parent=72 // pred_region
          %s863 = smul.u32 8, %s15
        $region81: #{cnn_block_forward.3} parent=72 // pred_fallthru
          _
      $region73: #{cnn_block_forward.3} parent=5 // pred_fallthru
        _
      %p864 = scmp.le.s32.totalorder 2, %s10
      // Predicated region
      $region82: #{cnn_block_forward.3} parent=5 // pred_check
        %p865 = pneg %p864
      $region83: #{cnn_block_forward.3} parent=5 // pred_check_branch
        %867 = sbr.rel (%p865) target = $region85
      $region84: #{cnn_block_forward.3} parent=5 // pred_region
        %s868 = ssub.s32 %s10, 2
        // Predicated region
        $region86: #{cnn_block_forward.3} parent=84 // pred_check
          %p869 = pneg %p128
        $region87: #{cnn_block_forward.3} parent=84 // pred_check_branch
          %871 = sbr.rel (%p869) target = $region89
        $region88: #{cnn_block_forward.3} parent=84 // pred_region
          %s872 = smul.u32 8, %s16
          %p873 = scmp.lt.s32.totalorder %s872, 15
          %s874 = scalar_select %p873, %s872, 15
          %s875 = smul.addr %s874, 8
          %s876 = scalar_lea.vmem %s4, %s875
        $region89: #{cnn_block_forward.3} parent=84 // pred_fallthru
          _
      $region85: #{cnn_block_forward.3} parent=5 // pred_fallthru
        _
    $region6: #{cnn_block_forward.3} parent=1 // loop_footer
      %s14 = sadd.s32 1, %s10
    $region7: #{cnn_block_forward.3} parent=1 // loop_footer_branch
      %9 = sbr.rel target = $region3
    $region8: #{cnn_block_forward.3} parent=1 // loop_exit
      _

</llo_original>
